<compile_context>
chip_gen: v7x
topology: tpu7x:2x2x1
jax: 0.10.0
libtpu: 0.0.40
codegen_flags: <defaults>
</compile_context>

<pallas_src>
import functools

import jax
import jax.numpy as jnp
from jax import lax
from jax.experimental import pallas as pl
from jax.experimental.pallas import tpu as pltpu

# ----- model constants -----
AA_EMBEDDING_SIZE = 27
MOD_FEATURE_SIZE = 109
MOD_FIX_K = 6
MOD_HIDDEN = 8
MAX_INSTRUMENT_NUM = 8
META_DIM = 8          # assumption: meta embedding width used by *_cat_Meta blocks
HIDDEN = 64           # real module hard-codes 512; reduced for the small example

BATCH_TILE = 8        # sublane-aligned batch tile (grid axis, "parallel")
OUT_LANE_PAD = 128    # lane padding of the tiny output-LSTM hidden dim
VMEM_LIMIT_BYTES = 48 * 1024 * 1024   # sized for real HIDDEN=512; demo footprint is tiny


# =====================  Pallas kernels  =====================

def _sigmoid(x):
    # exp on the EUP + approximate reciprocal (EUP vrcp) keeps the divide off the
    # VALU inside the serial recurrence critical path.
    return pl.reciprocal(1.0 + jnp.exp(-x), approx=True)


def _pregates(x_ref, wih_ref, b_ref, pre_ref):
    """pre = X @ W_ih + b for ALL timesteps: one big MXU matmul, hoisted out of
    the recurrence (bias folded in here, added exactly once)."""
    L, Bt, In = x_ref.shape
    four_h = wih_ref.shape[1]
    x2d = x_ref[...].reshape(L * Bt, In)
    pre = jnp.dot(x2d, wih_ref[...], preferred_element_type=jnp.float32) + b_ref[...]
    pre_ref[...] = pre.reshape(L, Bt, four_h)


def _lstm_recurrence(pre_ref, whh_ref, out_ref, *, lane_start, reverse):
    """Serial LSTM recurrence over pre-computed input gates.

    pre_ref: (L, Bt, 4H) VMEM scratch holding x@W_ih + b (gate order i,f,g,o)
    whh_ref: (H, 4H)     fused recurrent weights
    out_ref: (L, Bt, >= lane_start+H); h_t written at lane offset lane_start
    """
    L, Bt, four_h = pre_ref.shape
    H = four_h // 4
    whh = whh_ref[...]                         # loop-invariant load

    def step(s, carry):
        t = (L - 1 - s) if reverse else s
        h, c = carry
        gates = pre_ref[t] + jnp.dot(h, whh, preferred_element_type=jnp.float32)
        i = _sigmoid(gates[:, 0 * H:1 * H])
        f = _sigmoid(gates[:, 1 * H:2 * H])
        g = jnp.tanh(gates[:, 2 * H:3 * H])
        o = _sigmoid(gates[:, 3 * H:4 * H])
        c = f * c + i * g
        h = o * jnp.tanh(c)
        out_ref[t, :, lane_start:lane_start + H] = h
        return (h, c)

    z = jnp.zeros((Bt, H), jnp.float32)
    lax.fori_loop(0, L, step, (z, z))


def _bilstm_kernel(x_ref, wih_f, whh_f, b_f, wih_b, whh_b, b_b,
                   out_ref, pre_f, pre_b):
    """Fused bidirectional LSTM layer over one (L, Bt, In) batch tile.
    Writes fwd hidden states into lanes [0,H) and bwd into [H,2H) of out_ref."""
    H = whh_f.shape[0]
    _pregates(x_ref, wih_f, b_f, pre_f)
    _pregates(x_ref, wih_b, b_b, pre_b)
    _lstm_recurrence(pre_f, whh_f, out_ref, lane_start=0, reverse=False)
    _lstm_recurrence(pre_b, whh_b, out_ref, lane_start=H, reverse=True)


def _unilstm_kernel(x_ref, wih, whh, b, out_ref, pre):
    """Unidirectional LSTM layer (hidden dim lane-padded by the caller)."""
    _pregates(x_ref, wih, b, pre)
    _lstm_recurrence(pre, whh, out_ref, lane_start=0, reverse=False)


# =====================  pallas_call wrappers  =====================

def _compiler_params():
    return pltpu.CompilerParams(dimension_semantics=("parallel",),
                                vmem_limit_bytes=VMEM_LIMIT_BYTES)


def _full_spec(arr):
    n = arr.ndim
    return pl.BlockSpec(arr.shape, lambda i: (0,) * n)


def bilstm_layer(x_lbf, fwd_params, bwd_params):
    """Bidirectional LSTM, time-major (L, Bp, In) -> (L, Bp, 2H); Bp % BATCH_TILE == 0."""
    L, Bp, In = x_lbf.shape
    wih_f, whh_f, b_f = fwd_params
    wih_b, whh_b, b_b = bwd_params
    H = whh_f.shape[0]
    bt = BATCH_TILE
    tile_map = lambda i: (0, i, 0)
    return pl.pallas_call(
        _bilstm_kernel,
        out_shape=jax.ShapeDtypeStruct((L, Bp, 2 * H), jnp.float32),
        grid=(Bp // bt,),
        in_specs=[pl.BlockSpec((L, bt, In), tile_map),
                  _full_spec(wih_f), _full_spec(whh_f), _full_spec(b_f),
                  _full_spec(wih_b), _full_spec(whh_b), _full_spec(b_b)],
        out_specs=pl.BlockSpec((L, bt, 2 * H), tile_map),
        scratch_shapes=[pltpu.VMEM((L, bt, 4 * H), jnp.float32),
                        pltpu.VMEM((L, bt, 4 * H), jnp.float32)],
        compiler_params=_compiler_params(),
    )(x_lbf, wih_f, whh_f, b_f, wih_b, whh_b, b_b)


def unilstm_layer(x_lbf, params):
    L, Bp, In = x_lbf.shape
    wih, whh, b = params
    H = whh.shape[0]
    bt = BATCH_TILE
    tile_map = lambda i: (0, i, 0)
    return pl.pallas_call(
        _unilstm_kernel,
        out_shape=jax.ShapeDtypeStruct((L, Bp, H), jnp.float32),
        grid=(Bp // bt,),
        in_specs=[pl.BlockSpec((L, bt, In), tile_map),
                  _full_spec(wih), _full_spec(whh), _full_spec(b)],
        out_specs=pl.BlockSpec((L, bt, H), tile_map),
        scratch_shapes=[pltpu.VMEM((L, bt, 4 * H), jnp.float32)],
        compiler_params=_compiler_params(),
    )(x_lbf, wih, whh, b)


# =====================  parameters  =====================

def _lstm_dir_params(key, in_features, hidden):
    """Fused-gate params: W_ih:(In,4H), W_hh:(H,4H), b:(1,4H) with b_ih+b_hh folded;
    gate order i,f,g,o along the 4H axis (matches torch weight layout)."""
    k1, k2, k3 = jax.random.split(key, 3)
    s = 1.0 / jnp.sqrt(jnp.float32(hidden))
    wih = jax.random.uniform(k1, (in_features, 4 * hidden), jnp.float32, -s, s)
    whh = jax.random.uniform(k2, (hidden, 4 * hidden), jnp.float32, -s, s)
    b = jax.random.uniform(k3, (1, 4 * hidden), jnp.float32, -s, s)
    return (wih, whh, b)


def _pad_lstm_lanes(params, hidden, hidden_pad):
    """Zero-pad fused-gate LSTM params from true hidden H to lane-padded Hp.

    Padded hidden channels provably stay exactly 0 through the recurrence
    (zero pre-gates, zero W_hh columns -> g=tanh(0)=0 -> c=h=0), so lanes >= H
    of the output can be read back as zeros (used to fuse the modloss mask)."""
    wih, whh, b = params
    In = wih.shape[0]
    H, Hp = hidden, hidden_pad
    wih_p = jnp.zeros((In, 4 * Hp), jnp.float32)
    whh_p = jnp.zeros((Hp, 4 * Hp), jnp.float32)
    b_p = jnp.zeros((1, 4 * Hp), jnp.float32)
    for k in range(4):
        wih_p = wih_p.at[:, k * Hp:k * Hp + H].set(wih[:, k * H:(k + 1) * H])
        whh_p = whh_p.at[:H, k * Hp:k * Hp + H].set(whh[:, k * H:(k + 1) * H])
        b_p = b_p.at[:, k * Hp:k * Hp + H].set(b[:, k * H:(k + 1) * H])
    return (wih_p, whh_p, b_p)


def init_params(key, num_frag_types, num_modloss_types):
    num_non_modloss = num_frag_types - num_modloss_types
    keys = iter(jax.random.split(key, 16))
    p = {}
    # Mod_Embedding_FixFirstK: Linear(109-6 -> 8-6, bias=False)
    p["mod_w"] = jax.random.uniform(
        next(keys), (MOD_FEATURE_SIZE - MOD_FIX_K, MOD_HIDDEN - MOD_FIX_K),
        jnp.float32, -0.1, 0.1)
    # InputMetaNet (input side): Linear(MAX_INSTRUMENT_NUM+1 -> META_DIM-1)
    p["meta_in_w"] = jax.random.uniform(
        next(keys), (MAX_INSTRUMENT_NUM + 1, META_DIM - 1), jnp.float32, -0.3, 0.3)
    p["meta_in_b"] = jax.random.uniform(next(keys), (META_DIM - 1,), jnp.float32, -0.3, 0.3)
    # InputAALSTM_cat_Meta LSTM: BiLSTM(27+8 -> HIDDEN-META_DIM), 1 layer
    h_in = (HIDDEN - META_DIM) // 2
    p["in_lstm_f"] = _lstm_dir_params(next(keys), AA_EMBEDDING_SIZE + MOD_HIDDEN, h_in)
    p["in_lstm_b"] = _lstm_dir_params(next(keys), AA_EMBEDDING_SIZE + MOD_HIDDEN, h_in)
    # hidden_nn: SeqLSTM(HIDDEN, HIDDEN, rnn_layer=2, bidirectional=True)
    h_hid = HIDDEN // 2
    p["hid_l0_f"] = _lstm_dir_params(next(keys), HIDDEN, h_hid)
    p["hid_l0_b"] = _lstm_dir_params(next(keys), HIDDEN, h_hid)
    p["hid_l1_f"] = _lstm_dir_params(next(keys), HIDDEN, h_hid)
    p["hid_l1_b"] = _lstm_dir_params(next(keys), HIDDEN, h_hid)
    # OutputLSTM_cat_Meta: its own InputMetaNet + uni LSTM(HIDDEN+META_DIM -> num_non_modloss)
    p["meta_out_w"] = jax.random.uniform(
        next(keys), (MAX_INSTRUMENT_NUM + 1, META_DIM - 1), jnp.float32, -0.3, 0.3)
    p["meta_out_b"] = jax.random.uniform(next(keys), (META_DIM - 1,), jnp.float32, -0.3, 0.3)
    out_lstm = _lstm_dir_params(next(keys), HIDDEN + META_DIM, num_non_modloss)
    # Lane-pad the tiny output LSTM so its per-step store is lane-dense and the
    # output channels >= num_non_modloss are exactly zero.
    p["out_lstm"] = _pad_lstm_lanes(out_lstm, num_non_modloss, OUT_LANE_PAD)
    return p


# =====================  forward pass  =====================

def forward(params, aa_indices, mod_x, charges, NCEs, instrument_indices,
            num_frag_types, num_modloss_types, mask_modloss=True):
    B, L = aa_indices.shape
    num_non_modloss = num_frag_types - num_modloss_types
    B_pad = ((B + BATCH_TILE - 1) // BATCH_TILE) * BATCH_TILE

    # ---------- tiny feature nets: plain jnp (pallas_call overhead would dominate) ----------
    # Mod_Embedding_FixFirstK: Linear(103 -> 2, bias=False); first 6 features pass through
    mod_proj = jnp.einsum("blf,fo->blo", mod_x[:, :, MOD_FIX_K:], params["mod_w"])
    mod_emb = jnp.concatenate([mod_x[:, :, :MOD_FIX_K], mod_proj], axis=-1)       # (B,L,8)
    aa_x = jax.nn.one_hot(aa_indices, AA_EMBEDDING_SIZE, dtype=jnp.float32)       # (B,L,27)
    x = jnp.concatenate([aa_x, mod_emb], axis=-1)                                 # (B,L,35)

    # InputMetaNet features (charge/NCE/instrument) for input_nn and output_nn
    inst_1h = jax.nn.one_hot(instrument_indices, MAX_INSTRUMENT_NUM, dtype=jnp.float32)
    meta_feat = jnp.concatenate([inst_1h, NCEs], axis=1)                          # (B,9)
    meta_in = jnp.concatenate(
        [meta_feat @ params["meta_in_w"] + params["meta_in_b"], charges], axis=1)   # (B,8)
    meta_out = jnp.concatenate(
        [meta_feat @ params["meta_out_w"] + params["meta_out_b"], charges], axis=1)  # (B,8)

    # ---------- time-major once; pad batch to a sublane multiple once ----------
    x = jnp.transpose(x, (1, 0, 2))                                               # (L,B,35)
    x = jnp.pad(x, ((0, 0), (0, B_pad - B), (0, 0)))
    meta_in = jnp.pad(meta_in, ((0, B_pad - B), (0, 0)))
    meta_out = jnp.pad(meta_out, ((0, B_pad - B), (0, 0)))
    meta_in_seq = jnp.broadcast_to(meta_in[None], (L, B_pad, META_DIM))
    meta_out_seq = jnp.broadcast_to(meta_out[None], (L, B_pad, META_DIM))

    # ---------- input_nn: InputAALSTM_cat_Meta ----------
    x = bilstm_layer(x, params["in_lstm_f"], params["in_lstm_b"])                 # (L,Bp,H-meta)
    in_x = jnp.concatenate([x, meta_in_seq], axis=-1)                             # (L,Bp,HIDDEN)
    # dropout: identity at inference time

    # ---------- hidden_nn: 2-layer BiLSTM ----------
    hidden_x = bilstm_layer(in_x, params["hid_l0_f"], params["hid_l0_b"])
    hidden_x = bilstm_layer(hidden_x, params["hid_l1_f"], params["hid_l1_b"])     # (L,Bp,HIDDEN)

    # ---------- output_nn: OutputLSTM_cat_Meta (hidden lane-padded to 128) ----------
    out_in = jnp.concatenate([hidden_x, meta_out_seq], axis=-1)                   # (L,Bp,HIDDEN+meta)
    out_pad = unilstm_layer(out_in, params["out_lstm"])                           # (L,Bp,128)

    if num_modloss_types > 0 and not mask_modloss:
        # TODO(synk): non-masked modloss branch (modloss_nn) not exercised;
        # the module is constructed with mask_modloss=True by default.
        raise NotImplementedError("non-masked modloss branch not implemented")

    # Channels [num_non_modloss:) of out_pad are exactly zero (zero-padded gate
    # weights), so slicing to num_frag_types realizes the masked-modloss zero
    # concat with no extra copy.
    n_out = num_frag_types if num_modloss_types > 0 else num_non_modloss
    out = out_pad[3:, :B, :n_out]                                                 # (L-3,B,n_out)
    return jnp.transpose(out, (1, 0, 2))                                          # (B,L-3,n_out)


# =====================  demo  =====================

if __name__ == "__main__":
    key = jax.random.PRNGKey(0)
    kp, k1, k2, k3, k4, k5 = jax.random.split(key, 6)

    B, L = 2, 8
    num_frag_types, num_modloss_types = 8, 2

    params = init_params(kp, num_frag_types, num_modloss_types)

    aa_indices = jax.random.randint(k1, (B, L), 0, AA_EMBEDDING_SIZE)
    mod_x = jax.random.uniform(k2, (B, L, MOD_FEATURE_SIZE), jnp.float32)
    charges = jax.random.uniform(k3, (B, 1), jnp.float32, 1.0, 3.0)
    NCEs = jax.random.uniform(k4, (B, 1), jnp.float32, 0.2, 0.4)
    instrument_indices = jax.random.randint(k5, (B,), 0, MAX_INSTRUMENT_NUM)

    fwd = jax.jit(functools.partial(forward,
                                    num_frag_types=num_frag_types,
                                    num_modloss_types=num_modloss_types,
                                    mask_modloss=True))
    out = fwd(params, aa_indices, mod_x, charges, NCEs, instrument_indices)
    out = jax.block_until_ready(out)

    assert out.shape == (B, L - 3, num_frag_types), out.shape
    assert out.dtype == jnp.float32
    print("KERNEL_OK")
</pallas_src>

<mosaic_0001>
module attributes {stable_mosaic.version = 11 : i64} {
  func.func @_unilstm_kernel(%arg0: i32, %arg1: memref<8x8x72xf32, #tpu.memory_space<vmem>>, %arg2: memref<72x512xf32, #tpu.memory_space<vmem>>, %arg3: memref<128x512xf32, #tpu.memory_space<vmem>>, %arg4: memref<1x512xf32, #tpu.memory_space<vmem>>, %arg5: memref<8x8x128xf32, #tpu.memory_space<vmem>>, %arg6: memref<8x8x512xf32, #tpu.memory_space<vmem>>) attributes {dimension_semantics = [#tpu.dimension_semantics<parallel>], iteration_bounds = array<i64: 1>, scalar_prefetch = 0 : i64, scratch_operands = 1 : i64, tpu.core_type = #tpu.core_type<tc>, window_params = [{transform_indices = @transform_0, window_bounds = array<i64: 8, 8, 72>}, {pipeline_mode = #tpu.pipeline_mode<synchronous>, transform_indices = @transform_1, window_bounds = array<i64: 72, 512>}, {pipeline_mode = #tpu.pipeline_mode<synchronous>, transform_indices = @transform_2, window_bounds = array<i64: 128, 512>}, {pipeline_mode = #tpu.pipeline_mode<synchronous>, transform_indices = @transform_3, window_bounds = array<i64: 1, 512>}, {transform_indices = @transform_4, window_bounds = array<i64: 8, 8, 128>}]} {
    %c0 = arith.constant 0 : index
    %c0_0 = arith.constant 0 : index
    %c0_1 = arith.constant 0 : index
    %0 = vector.load %arg1[%c0, %c0_0, %c0_1] : memref<8x8x72xf32, #tpu.memory_space<vmem>>, vector<8x8x72xf32>
    %1 = vector.shape_cast %0 : vector<8x8x72xf32> to vector<64x72xf32>
    %c0_2 = arith.constant 0 : index
    %c0_3 = arith.constant 0 : index
    %2 = vector.load %arg2[%c0_2, %c0_3] : memref<72x512xf32, #tpu.memory_space<vmem>>, vector<72x512xf32>
    %cst = arith.constant dense<0.000000e+00> : vector<64x512xf32>
    %3 = tpu.matmul %1, %2, %cst {dimension_numbers = #tpu.dot_dimension_numbers<[1], [0], [0], [1], [0, 0, 1, 1], [], []>} : vector<64x72xf32>, vector<72x512xf32>, vector<64x512xf32> -> vector<64x512xf32>
    %c0_4 = arith.constant 0 : index
    %c0_5 = arith.constant 0 : index
    %4 = vector.load %arg4[%c0_4, %c0_5] : memref<1x512xf32, #tpu.memory_space<vmem>>, vector<1x512xf32>
    %5 = vector.broadcast %4 : vector<1x512xf32> to vector<64x512xf32>
    %6 = arith.addf %3, %5 : vector<64x512xf32>
    %7 = vector.shape_cast %6 : vector<64x512xf32> to vector<8x8x512xf32>
    %c0_6 = arith.constant 0 : index
    %c0_7 = arith.constant 0 : index
    %c0_8 = arith.constant 0 : index
    %8 = vector.load %arg6[%c0_6, %c0_7, %c0_8] : memref<8x8x512xf32, #tpu.memory_space<vmem>>, vector<8x8x512xf32>
    tpu.vector_store %arg6[%c0_6, %c0_7, %c0_8], %7 {strides = array<i32>} : memref<8x8x512xf32, #tpu.memory_space<vmem>>, vector<8x8x512xf32>,
    %c0_9 = arith.constant 0 : index
    %c0_10 = arith.constant 0 : index
    %9 = vector.load %arg3[%c0_9, %c0_10] : memref<128x512xf32, #tpu.memory_space<vmem>>, vector<128x512xf32>
    %cst_11 = arith.constant 0.000000e+00 : f32
    %10 = vector.broadcast %cst_11 : f32 to vector<8x128xf32>
    %c0_i32 = arith.constant 0 : i32
    %c8_i32 = arith.constant 8 : i32
    %11 = arith.addi %c0_i32, %c8_i32 : i32
    %c1_i32 = arith.constant 1 : i32
    %12:2 = scf.for %arg7 = %c0_i32 to %11 step %c1_i32 iter_args(%arg8 = %10, %arg9 = %10) -> (vector<8x128xf32>, vector<8x128xf32>)  : i32 {
      %13 = arith.index_cast %arg7 : i32 to index
      %c0_13 = arith.constant 0 : index
      %c0_14 = arith.constant 0 : index
      %14 = vector.load %arg6[%13, %c0_13, %c0_14] : memref<8x8x512xf32, #tpu.memory_space<vmem>>, vector<1x8x512xf32>
      %15 = vector.shape_cast %14 : vector<1x8x512xf32> to vector<8x512xf32>
      %cst_15 = arith.constant dense<0.000000e+00> : vector<8x512xf32>
      %16 = tpu.matmul %arg8, %9, %cst_15 {dimension_numbers = #tpu.dot_dimension_numbers<[1], [0], [0], [1], [0, 0, 1, 1], [], []>} : vector<8x128xf32>, vector<128x512xf32>, vector<8x512xf32> -> vector<8x512xf32>
      %17 = arith.addf %15, %16 : vector<8x512xf32>
      %18 = vector.extract_strided_slice %17 {offsets = [0, 0], sizes = [8, 128], strides = [1, 1]} : vector<8x512xf32> to vector<8x128xf32>
      %cst_16 = arith.constant 0.000000e+00 : f32
      %19 = vector.broadcast %cst_16 : f32 to vector<8x128xf32>
      %20 = arith.subf %19, %18 : vector<8x128xf32>
      %21 = math.exp %20 : vector<8x128xf32>
      %cst_17 = arith.constant 1.000000e+00 : f32
      %22 = vector.broadcast %cst_17 : f32 to vector<8x128xf32>
      %23 = arith.addf %22, %21 : vector<8x128xf32>
      %24 = tpu.reciprocal %23 {approx = true} : vector<8x128xf32> -> vector<8x128xf32>
      %25 = vector.extract_strided_slice %17 {offsets = [0, 128], sizes = [8, 128], strides = [1, 1]} : vector<8x512xf32> to vector<8x128xf32>
      %cst_18 = arith.constant 0.000000e+00 : f32
      %26 = vector.broadcast %cst_18 : f32 to vector<8x128xf32>
      %27 = arith.subf %26, %25 : vector<8x128xf32>
      %28 = math.exp %27 : vector<8x128xf32>
      %cst_19 = arith.constant 1.000000e+00 : f32
      %29 = vector.broadcast %cst_19 : f32 to vector<8x128xf32>
      %30 = arith.addf %29, %28 : vector<8x128xf32>
      %31 = tpu.reciprocal %30 {approx = true} : vector<8x128xf32> -> vector<8x128xf32>
      %32 = vector.extract_strided_slice %17 {offsets = [0, 256], sizes = [8, 128], strides = [1, 1]} : vector<8x512xf32> to vector<8x128xf32>
      %33 = math.tanh %32 : vector<8x128xf32>
      %34 = vector.extract_strided_slice %17 {offsets = [0, 384], sizes = [8, 128], strides = [1, 1]} : vector<8x512xf32> to vector<8x128xf32>
      %cst_20 = arith.constant 0.000000e+00 : f32
      %35 = vector.broadcast %cst_20 : f32 to vector<8x128xf32>
      %36 = arith.subf %35, %34 : vector<8x128xf32>
      %37 = math.exp %36 : vector<8x128xf32>
      %cst_21 = arith.constant 1.000000e+00 : f32
      %38 = vector.broadcast %cst_21 : f32 to vector<8x128xf32>
      %39 = arith.addf %38, %37 : vector<8x128xf32>
      %40 = tpu.reciprocal %39 {approx = true} : vector<8x128xf32> -> vector<8x128xf32>
      %41 = arith.mulf %31, %arg9 : vector<8x128xf32>
      %42 = arith.mulf %24, %33 : vector<8x128xf32>
      %43 = arith.addf %41, %42 : vector<8x128xf32>
      %44 = math.tanh %43 : vector<8x128xf32>
      %45 = arith.mulf %40, %44 : vector<8x128xf32>
      %46 = arith.index_cast %arg7 : i32 to index
      %c0_22 = arith.constant 0 : index
      %c0_23 = arith.constant 0 : index
      %47 = vector.load %arg5[%46, %c0_22, %c0_23] : memref<8x8x128xf32, #tpu.memory_space<vmem>>, vector<1x8x128xf32>
      %48 = vector.shape_cast %47 : vector<1x8x128xf32> to vector<8x128xf32>
      %49 = vector.shape_cast %45 : vector<8x128xf32> to vector<1x8x128xf32>
      tpu.vector_store %arg5[%46, %c0_22, %c0_23], %49 {strides = array<i32>} : memref<8x8x128xf32, #tpu.memory_space<vmem>>, vector<1x8x128xf32>,
      scf.yield %45, %43 : vector<8x128xf32>, vector<8x128xf32>
    }
    %c8_i32_12 = arith.constant 8 : i32
    return
  }
  func.func @transform_0(%arg0: i32) -> (i32, i32, i32) {
    %c0_i32 = arith.constant 0 : i32
    %c0_i32_0 = arith.constant 0 : i32
    %c0_i32_1 = arith.constant 0 : i32
    return %c0_i32, %arg0, %c0_i32_0 : i32, i32, i32
  }
  func.func @transform_1(%arg0: i32) -> (i32, i32) {
    %c0_i32 = arith.constant 0 : i32
    %c0_i32_0 = arith.constant 0 : i32
    %c0_i32_1 = arith.constant 0 : i32
    return %c0_i32, %c0_i32_0 : i32, i32
  }
  func.func @transform_2(%arg0: i32) -> (i32, i32) {
    %c0_i32 = arith.constant 0 : i32
    %c0_i32_0 = arith.constant 0 : i32
    %c0_i32_1 = arith.constant 0 : i32
    return %c0_i32, %c0_i32_0 : i32, i32
  }
  func.func @transform_3(%arg0: i32) -> (i32, i32) {
    %c0_i32 = arith.constant 0 : i32
    %c0_i32_0 = arith.constant 0 : i32
    %c0_i32_1 = arith.constant 0 : i32
    return %c0_i32, %c0_i32_0 : i32, i32
  }
  func.func @transform_4(%arg0: i32) -> (i32, i32, i32) {
    %c0_i32 = arith.constant 0 : i32
    %c0_i32_0 = arith.constant 0 : i32
    %c0_i32_1 = arith.constant 0 : i32
    return %c0_i32, %arg0, %c0_i32_0 : i32, i32, i32
  }
}

module attributes {stable_mosaic.version = 11 : i64} {
  func.func @_bilstm_kernel(%arg0: i32, %arg1: memref<8x8x64xf32, #tpu.memory_space<vmem>>, %arg2: memref<64x128xf32, #tpu.memory_space<vmem>>, %arg3: memref<32x128xf32, #tpu.memory_space<vmem>>, %arg4: memref<1x128xf32, #tpu.memory_space<vmem>>, %arg5: memref<64x128xf32, #tpu.memory_space<vmem>>, %arg6: memref<32x128xf32, #tpu.memory_space<vmem>>, %arg7: memref<1x128xf32, #tpu.memory_space<vmem>>, %arg8: memref<8x8x64xf32, #tpu.memory_space<vmem>>, %arg9: memref<8x8x128xf32, #tpu.memory_space<vmem>>, %arg10: memref<8x8x128xf32, #tpu.memory_space<vmem>>) attributes {dimension_semantics = [#tpu.dimension_semantics<parallel>], iteration_bounds = array<i64: 1>, scalar_prefetch = 0 : i64, scratch_operands = 2 : i64, tpu.core_type = #tpu.core_type<tc>, window_params = [{transform_indices = @transform_0, window_bounds = array<i64: 8, 8, 64>}, {pipeline_mode = #tpu.pipeline_mode<synchronous>, transform_indices = @transform_1, window_bounds = array<i64: 64, 128>}, {pipeline_mode = #tpu.pipeline_mode<synchronous>, transform_indices = @transform_2, window_bounds = array<i64: 32, 128>}, {pipeline_mode = #tpu.pipeline_mode<synchronous>, transform_indices = @transform_3, window_bounds = array<i64: 1, 128>}, {pipeline_mode = #tpu.pipeline_mode<synchronous>, transform_indices = @transform_4, window_bounds = array<i64: 64, 128>}, {pipeline_mode = #tpu.pipeline_mode<synchronous>, transform_indices = @transform_5, window_bounds = array<i64: 32, 128>}, {pipeline_mode = #tpu.pipeline_mode<synchronous>, transform_indices = @transform_6, window_bounds = array<i64: 1, 128>}, {transform_indices = @transform_7, window_bounds = array<i64: 8, 8, 64>}]} {
    %c0 = arith.constant 0 : index
    %c0_0 = arith.constant 0 : index
    %c0_1 = arith.constant 0 : index
    %0 = vector.load %arg1[%c0, %c0_0, %c0_1] : memref<8x8x64xf32, #tpu.memory_space<vmem>>, vector<8x8x64xf32>
    %1 = vector.shape_cast %0 : vector<8x8x64xf32> to vector<64x64xf32>
    %c0_2 = arith.constant 0 : index
    %c0_3 = arith.constant 0 : index
    %2 = vector.load %arg2[%c0_2, %c0_3] : memref<64x128xf32, #tpu.memory_space<vmem>>, vector<64x128xf32>
    %cst = arith.constant dense<0.000000e+00> : vector<64x128xf32>
    %3 = tpu.matmul %1, %2, %cst {dimension_numbers = #tpu.dot_dimension_numbers<[1], [0], [0], [1], [0, 0, 1, 1], [], []>} : vector<64x64xf32>, vector<64x128xf32>, vector<64x128xf32> -> vector<64x128xf32>
    %c0_4 = arith.constant 0 : index
    %c0_5 = arith.constant 0 : index
    %4 = vector.load %arg4[%c0_4, %c0_5] : memref<1x128xf32, #tpu.memory_space<vmem>>, vector<1x128xf32>
    %5 = vector.broadcast %4 : vector<1x128xf32> to vector<64x128xf32>
    %6 = arith.addf %3, %5 : vector<64x128xf32>
    %7 = vector.shape_cast %6 : vector<64x128xf32> to vector<8x8x128xf32>
    %c0_6 = arith.constant 0 : index
    %c0_7 = arith.constant 0 : index
    %c0_8 = arith.constant 0 : index
    %8 = vector.load %arg9[%c0_6, %c0_7, %c0_8] : memref<8x8x128xf32, #tpu.memory_space<vmem>>, vector<8x8x128xf32>
    tpu.vector_store %arg9[%c0_6, %c0_7, %c0_8], %7 {strides = array<i32>} : memref<8x8x128xf32, #tpu.memory_space<vmem>>, vector<8x8x128xf32>,
    %c0_9 = arith.constant 0 : index
    %c0_10 = arith.constant 0 : index
    %c0_11 = arith.constant 0 : index
    %9 = vector.load %arg1[%c0_9, %c0_10, %c0_11] : memref<8x8x64xf32, #tpu.memory_space<vmem>>, vector<8x8x64xf32>
    %10 = vector.shape_cast %9 : vector<8x8x64xf32> to vector<64x64xf32>
    %c0_12 = arith.constant 0 : index
    %c0_13 = arith.constant 0 : index
    %11 = vector.load %arg5[%c0_12, %c0_13] : memref<64x128xf32, #tpu.memory_space<vmem>>, vector<64x128xf32>
    %cst_14 = arith.constant dense<0.000000e+00> : vector<64x128xf32>
    %12 = tpu.matmul %10, %11, %cst_14 {dimension_numbers = #tpu.dot_dimension_numbers<[1], [0], [0], [1], [0, 0, 1, 1], [], []>} : vector<64x64xf32>, vector<64x128xf32>, vector<64x128xf32> -> vector<64x128xf32>
    %c0_15 = arith.constant 0 : index
    %c0_16 = arith.constant 0 : index
    %13 = vector.load %arg7[%c0_15, %c0_16] : memref<1x128xf32, #tpu.memory_space<vmem>>, vector<1x128xf32>
    %14 = vector.broadcast %13 : vector<1x128xf32> to vector<64x128xf32>
    %15 = arith.addf %12, %14 : vector<64x128xf32>
    %16 = vector.shape_cast %15 : vector<64x128xf32> to vector<8x8x128xf32>
    %c0_17 = arith.constant 0 : index
    %c0_18 = arith.constant 0 : index
    %c0_19 = arith.constant 0 : index
    %17 = vector.load %arg10[%c0_17, %c0_18, %c0_19] : memref<8x8x128xf32, #tpu.memory_space<vmem>>, vector<8x8x128xf32>
    tpu.vector_store %arg10[%c0_17, %c0_18, %c0_19], %16 {strides = array<i32>} : memref<8x8x128xf32, #tpu.memory_space<vmem>>, vector<8x8x128xf32>,
    %c0_20 = arith.constant 0 : index
    %c0_21 = arith.constant 0 : index
    %18 = vector.load %arg3[%c0_20, %c0_21] : memref<32x128xf32, #tpu.memory_space<vmem>>, vector<32x128xf32>
    %cst_22 = arith.constant 0.000000e+00 : f32
    %19 = vector.broadcast %cst_22 : f32 to vector<8x32xf32>
    %c0_i32 = arith.constant 0 : i32
    %c8_i32 = arith.constant 8 : i32
    %20 = arith.addi %c0_i32, %c8_i32 : i32
    %c1_i32 = arith.constant 1 : i32
    %21:2 = scf.for %arg11 = %c0_i32 to %20 step %c1_i32 iter_args(%arg12 = %19, %arg13 = %19) -> (vector<8x32xf32>, vector<8x32xf32>)  : i32 {
      %26 = arith.index_cast %arg11 : i32 to index
      %c0_31 = arith.constant 0 : index
      %c0_32 = arith.constant 0 : index
      %27 = vector.load %arg9[%26, %c0_31, %c0_32] : memref<8x8x128xf32, #tpu.memory_space<vmem>>, vector<1x8x128xf32>
      %28 = vector.shape_cast %27 : vector<1x8x128xf32> to vector<8x128xf32>
      %cst_33 = arith.constant dense<0.000000e+00> : vector<8x128xf32>
      %29 = tpu.matmul %arg12, %18, %cst_33 {dimension_numbers = #tpu.dot_dimension_numbers<[1], [0], [0], [1], [0, 0, 1, 1], [], []>} : vector<8x32xf32>, vector<32x128xf32>, vector<8x128xf32> -> vector<8x128xf32>
      %30 = arith.addf %28, %29 : vector<8x128xf32>
      %31 = vector.extract_strided_slice %30 {offsets = [0, 0], sizes = [8, 32], strides = [1, 1]} : vector<8x128xf32> to vector<8x32xf32>
      %cst_34 = arith.constant 0.000000e+00 : f32
      %32 = vector.broadcast %cst_34 : f32 to vector<8x32xf32>
      %33 = arith.subf %32, %31 : vector<8x32xf32>
      %34 = math.exp %33 : vector<8x32xf32>
      %cst_35 = arith.constant 1.000000e+00 : f32
      %35 = vector.broadcast %cst_35 : f32 to vector<8x32xf32>
      %36 = arith.addf %35, %34 : vector<8x32xf32>
      %37 = tpu.reciprocal %36 {approx = true} : vector<8x32xf32> -> vector<8x32xf32>
      %38 = vector.extract_strided_slice %30 {offsets = [0, 32], sizes = [8, 32], strides = [1, 1]} : vector<8x128xf32> to vector<8x32xf32>
      %cst_36 = arith.constant 0.000000e+00 : f32
      %39 = vector.broadcast %cst_36 : f32 to vector<8x32xf32>
      %40 = arith.subf %39, %38 : vector<8x32xf32>
      %41 = math.exp %40 : vector<8x32xf32>
      %cst_37 = arith.constant 1.000000e+00 : f32
      %42 = vector.broadcast %cst_37 : f32 to vector<8x32xf32>
      %43 = arith.addf %42, %41 : vector<8x32xf32>
      %44 = tpu.reciprocal %43 {approx = true} : vector<8x32xf32> -> vector<8x32xf32>
      %45 = vector.extract_strided_slice %30 {offsets = [0, 64], sizes = [8, 32], strides = [1, 1]} : vector<8x128xf32> to vector<8x32xf32>
      %46 = math.tanh %45 : vector<8x32xf32>
      %47 = vector.extract_strided_slice %30 {offsets = [0, 96], sizes = [8, 32], strides = [1, 1]} : vector<8x128xf32> to vector<8x32xf32>
      %cst_38 = arith.constant 0.000000e+00 : f32
      %48 = vector.broadcast %cst_38 : f32 to vector<8x32xf32>
      %49 = arith.subf %48, %47 : vector<8x32xf32>
      %50 = math.exp %49 : vector<8x32xf32>
      %cst_39 = arith.constant 1.000000e+00 : f32
      %51 = vector.broadcast %cst_39 : f32 to vector<8x32xf32>
      %52 = arith.addf %51, %50 : vector<8x32xf32>
      %53 = tpu.reciprocal %52 {approx = true} : vector<8x32xf32> -> vector<8x32xf32>
      %54 = arith.mulf %44, %arg13 : vector<8x32xf32>
      %55 = arith.mulf %37, %46 : vector<8x32xf32>
      %56 = arith.addf %54, %55 : vector<8x32xf32>
      %57 = math.tanh %56 : vector<8x32xf32>
      %58 = arith.mulf %53, %57 : vector<8x32xf32>
      %59 = arith.index_cast %arg11 : i32 to index
      %c0_40 = arith.constant 0 : index
      %c0_41 = arith.constant 0 : index
      %60 = vector.load %arg8[%59, %c0_40, %c0_41] : memref<8x8x64xf32, #tpu.memory_space<vmem>>, vector<1x8x32xf32>
      %61 = vector.shape_cast %60 : vector<1x8x32xf32> to vector<8x32xf32>
      %62 = vector.shape_cast %58 : vector<8x32xf32> to vector<1x8x32xf32>
      tpu.vector_store %arg8[%59, %c0_40, %c0_41], %62 {strides = array<i32>} : memref<8x8x64xf32, #tpu.memory_space<vmem>>, vector<1x8x32xf32>,
      scf.yield %58, %56 : vector<8x32xf32>, vector<8x32xf32>
    }
    %c8_i32_23 = arith.constant 8 : i32
    %c0_24 = arith.constant 0 : index
    %c0_25 = arith.constant 0 : index
    %22 = vector.load %arg6[%c0_24, %c0_25] : memref<32x128xf32, #tpu.memory_space<vmem>>, vector<32x128xf32>
    %cst_26 = arith.constant 0.000000e+00 : f32
    %23 = vector.broadcast %cst_26 : f32 to vector<8x32xf32>
    %c0_i32_27 = arith.constant 0 : i32
    %c8_i32_28 = arith.constant 8 : i32
    %24 = arith.addi %c0_i32_27, %c8_i32_28 : i32
    %c1_i32_29 = arith.constant 1 : i32
    %25:2 = scf.for %arg11 = %c0_i32_27 to %24 step %c1_i32_29 iter_args(%arg12 = %23, %arg13 = %23) -> (vector<8x32xf32>, vector<8x32xf32>)  : i32 {
      %c7_i32 = arith.constant 7 : i32
      %26 = arith.subi %c7_i32, %arg11 : i32
      %27 = arith.index_cast %26 : i32 to index
      %c0_31 = arith.constant 0 : index
      %c0_32 = arith.constant 0 : index
      %28 = vector.load %arg10[%27, %c0_31, %c0_32] : memref<8x8x128xf32, #tpu.memory_space<vmem>>, vector<1x8x128xf32>
      %29 = vector.shape_cast %28 : vector<1x8x128xf32> to vector<8x128xf32>
      %cst_33 = arith.constant dense<0.000000e+00> : vector<8x128xf32>
      %30 = tpu.matmul %arg12, %22, %cst_33 {dimension_numbers = #tpu.dot_dimension_numbers<[1], [0], [0], [1], [0, 0, 1, 1], [], []>} : vector<8x32xf32>, vector<32x128xf32>, vector<8x128xf32> -> vector<8x128xf32>
      %31 = arith.addf %29, %30 : vector<8x128xf32>
      %32 = vector.extract_strided_slice %31 {offsets = [0, 0], sizes = [8, 32], strides = [1, 1]} : vector<8x128xf32> to vector<8x32xf32>
      %cst_34 = arith.constant 0.000000e+00 : f32
      %33 = vector.broadcast %cst_34 : f32 to vector<8x32xf32>
      %34 = arith.subf %33, %32 : vector<8x32xf32>
      %35 = math.exp %34 : vector<8x32xf32>
      %cst_35 = arith.constant 1.000000e+00 : f32
      %36 = vector.broadcast %cst_35 : f32 to vector<8x32xf32>
      %37 = arith.addf %36, %35 : vector<8x32xf32>
      %38 = tpu.reciprocal %37 {approx = true} : vector<8x32xf32> -> vector<8x32xf32>
      %39 = vector.extract_strided_slice %31 {offsets = [0, 32], sizes = [8, 32], strides = [1, 1]} : vector<8x128xf32> to vector<8x32xf32>
      %cst_36 = arith.constant 0.000000e+00 : f32
      %40 = vector.broadcast %cst_36 : f32 to vector<8x32xf32>
      %41 = arith.subf %40, %39 : vector<8x32xf32>
      %42 = math.exp %41 : vector<8x32xf32>
      %cst_37 = arith.constant 1.000000e+00 : f32
      %43 = vector.broadcast %cst_37 : f32 to vector<8x32xf32>
      %44 = arith.addf %43, %42 : vector<8x32xf32>
      %45 = tpu.reciprocal %44 {approx = true} : vector<8x32xf32> -> vector<8x32xf32>
      %46 = vector.extract_strided_slice %31 {offsets = [0, 64], sizes = [8, 32], strides = [1, 1]} : vector<8x128xf32> to vector<8x32xf32>
      %47 = math.tanh %46 : vector<8x32xf32>
      %48 = vector.extract_strided_slice %31 {offsets = [0, 96], sizes = [8, 32], strides = [1, 1]} : vector<8x128xf32> to vector<8x32xf32>
      %cst_38 = arith.constant 0.000000e+00 : f32
      %49 = vector.broadcast %cst_38 : f32 to vector<8x32xf32>
      %50 = arith.subf %49, %48 : vector<8x32xf32>
      %51 = math.exp %50 : vector<8x32xf32>
      %cst_39 = arith.constant 1.000000e+00 : f32
      %52 = vector.broadcast %cst_39 : f32 to vector<8x32xf32>
      %53 = arith.addf %52, %51 : vector<8x32xf32>
      %54 = tpu.reciprocal %53 {approx = true} : vector<8x32xf32> -> vector<8x32xf32>
      %55 = arith.mulf %45, %arg13 : vector<8x32xf32>
      %56 = arith.mulf %38, %47 : vector<8x32xf32>
      %57 = arith.addf %55, %56 : vector<8x32xf32>
      %58 = math.tanh %57 : vector<8x32xf32>
      %59 = arith.mulf %54, %58 : vector<8x32xf32>
      %60 = arith.index_cast %26 : i32 to index
      %c0_40 = arith.constant 0 : index
      %c32 = arith.constant 32 : index
      %61 = vector.load %arg8[%60, %c0_40, %c32] : memref<8x8x64xf32, #tpu.memory_space<vmem>>, vector<1x8x32xf32>
      %62 = vector.shape_cast %61 : vector<1x8x32xf32> to vector<8x32xf32>
      %63 = vector.shape_cast %59 : vector<8x32xf32> to vector<1x8x32xf32>
      tpu.vector_store %arg8[%60, %c0_40, %c32], %63 {strides = array<i32>} : memref<8x8x64xf32, #tpu.memory_space<vmem>>, vector<1x8x32xf32>,
      scf.yield %59, %57 : vector<8x32xf32>, vector<8x32xf32>
    }
    %c8_i32_30 = arith.constant 8 : i32
    return
  }
  func.func @transform_0(%arg0: i32) -> (i32, i32, i32) {
    %c0_i32 = arith.constant 0 : i32
    %c0_i32_0 = arith.constant 0 : i32
    %c0_i32_1 = arith.constant 0 : i32
    return %c0_i32, %arg0, %c0_i32_0 : i32, i32, i32
  }
  func.func @transform_1(%arg0: i32) -> (i32, i32) {
    %c0_i32 = arith.constant 0 : i32
    %c0_i32_0 = arith.constant 0 : i32
    %c0_i32_1 = arith.constant 0 : i32
    return %c0_i32, %c0_i32_0 : i32, i32
  }
  func.func @transform_2(%arg0: i32) -> (i32, i32) {
    %c0_i32 = arith.constant 0 : i32
    %c0_i32_0 = arith.constant 0 : i32
    %c0_i32_1 = arith.constant 0 : i32
    return %c0_i32, %c0_i32_0 : i32, i32
  }
  func.func @transform_3(%arg0: i32) -> (i32, i32) {
    %c0_i32 = arith.constant 0 : i32
    %c0_i32_0 = arith.constant 0 : i32
    %c0_i32_1 = arith.constant 0 : i32
    return %c0_i32, %c0_i32_0 : i32, i32
  }
  func.func @transform_4(%arg0: i32) -> (i32, i32) {
    %c0_i32 = arith.constant 0 : i32
    %c0_i32_0 = arith.constant 0 : i32
    %c0_i32_1 = arith.constant 0 : i32
    return %c0_i32, %c0_i32_0 : i32, i32
  }
  func.func @transform_5(%arg0: i32) -> (i32, i32) {
    %c0_i32 = arith.constant 0 : i32
    %c0_i32_0 = arith.constant 0 : i32
    %c0_i32_1 = arith.constant 0 : i32
    return %c0_i32, %c0_i32_0 : i32, i32
  }
  func.func @transform_6(%arg0: i32) -> (i32, i32) {
    %c0_i32 = arith.constant 0 : i32
    %c0_i32_0 = arith.constant 0 : i32
    %c0_i32_1 = arith.constant 0 : i32
    return %c0_i32, %c0_i32_0 : i32, i32
  }
  func.func @transform_7(%arg0: i32) -> (i32, i32, i32) {
    %c0_i32 = arith.constant 0 : i32
    %c0_i32_0 = arith.constant 0 : i32
    %c0_i32_1 = arith.constant 0 : i32
    return %c0_i32, %arg0, %c0_i32_0 : i32, i32, i32
  }
}

module attributes {stable_mosaic.version = 11 : i64} {
  func.func @_bilstm_kernel(%arg0: i32, %arg1: memref<8x8x35xf32, #tpu.memory_space<vmem>>, %arg2: memref<35x112xf32, #tpu.memory_space<vmem>>, %arg3: memref<28x112xf32, #tpu.memory_space<vmem>>, %arg4: memref<1x112xf32, #tpu.memory_space<vmem>>, %arg5: memref<35x112xf32, #tpu.memory_space<vmem>>, %arg6: memref<28x112xf32, #tpu.memory_space<vmem>>, %arg7: memref<1x112xf32, #tpu.memory_space<vmem>>, %arg8: memref<8x8x56xf32, #tpu.memory_space<vmem>>, %arg9: memref<8x8x112xf32, #tpu.memory_space<vmem>>, %arg10: memref<8x8x112xf32, #tpu.memory_space<vmem>>) attributes {dimension_semantics = [#tpu.dimension_semantics<parallel>], iteration_bounds = array<i64: 1>, scalar_prefetch = 0 : i64, scratch_operands = 2 : i64, tpu.core_type = #tpu.core_type<tc>, window_params = [{transform_indices = @transform_0, window_bounds = array<i64: 8, 8, 35>}, {pipeline_mode = #tpu.pipeline_mode<synchronous>, transform_indices = @transform_1, window_bounds = array<i64: 35, 112>}, {pipeline_mode = #tpu.pipeline_mode<synchronous>, transform_indices = @transform_2, window_bounds = array<i64: 28, 112>}, {pipeline_mode = #tpu.pipeline_mode<synchronous>, transform_indices = @transform_3, window_bounds = array<i64: 1, 112>}, {pipeline_mode = #tpu.pipeline_mode<synchronous>, transform_indices = @transform_4, window_bounds = array<i64: 35, 112>}, {pipeline_mode = #tpu.pipeline_mode<synchronous>, transform_indices = @transform_5, window_bounds = array<i64: 28, 112>}, {pipeline_mode = #tpu.pipeline_mode<synchronous>, transform_indices = @transform_6, window_bounds = array<i64: 1, 112>}, {transform_indices = @transform_7, window_bounds = array<i64: 8, 8, 56>}]} {
    %c0 = arith.constant 0 : index
    %c0_0 = arith.constant 0 : index
    %c0_1 = arith.constant 0 : index
    %0 = vector.load %arg1[%c0, %c0_0, %c0_1] : memref<8x8x35xf32, #tpu.memory_space<vmem>>, vector<8x8x35xf32>
    %1 = vector.shape_cast %0 : vector<8x8x35xf32> to vector<64x35xf32>
    %c0_2 = arith.constant 0 : index
    %c0_3 = arith.constant 0 : index
    %2 = vector.load %arg2[%c0_2, %c0_3] : memref<35x112xf32, #tpu.memory_space<vmem>>, vector<35x112xf32>
    %cst = arith.constant dense<0.000000e+00> : vector<64x112xf32>
    %3 = tpu.matmul %1, %2, %cst {dimension_numbers = #tpu.dot_dimension_numbers<[1], [0], [0], [1], [0, 0, 1, 1], [], []>} : vector<64x35xf32>, vector<35x112xf32>, vector<64x112xf32> -> vector<64x112xf32>
    %c0_4 = arith.constant 0 : index
    %c0_5 = arith.constant 0 : index
    %4 = vector.load %arg4[%c0_4, %c0_5] : memref<1x112xf32, #tpu.memory_space<vmem>>, vector<1x112xf32>
    %5 = vector.broadcast %4 : vector<1x112xf32> to vector<64x112xf32>
    %6 = arith.addf %3, %5 : vector<64x112xf32>
    %7 = vector.shape_cast %6 : vector<64x112xf32> to vector<8x8x112xf32>
    %c0_6 = arith.constant 0 : index
    %c0_7 = arith.constant 0 : index
    %c0_8 = arith.constant 0 : index
    %8 = vector.load %arg9[%c0_6, %c0_7, %c0_8] : memref<8x8x112xf32, #tpu.memory_space<vmem>>, vector<8x8x112xf32>
    tpu.vector_store %arg9[%c0_6, %c0_7, %c0_8], %7 {strides = array<i32>} : memref<8x8x112xf32, #tpu.memory_space<vmem>>, vector<8x8x112xf32>,
    %c0_9 = arith.constant 0 : index
    %c0_10 = arith.constant 0 : index
    %c0_11 = arith.constant 0 : index
    %9 = vector.load %arg1[%c0_9, %c0_10, %c0_11] : memref<8x8x35xf32, #tpu.memory_space<vmem>>, vector<8x8x35xf32>
    %10 = vector.shape_cast %9 : vector<8x8x35xf32> to vector<64x35xf32>
    %c0_12 = arith.constant 0 : index
    %c0_13 = arith.constant 0 : index
    %11 = vector.load %arg5[%c0_12, %c0_13] : memref<35x112xf32, #tpu.memory_space<vmem>>, vector<35x112xf32>
    %cst_14 = arith.constant dense<0.000000e+00> : vector<64x112xf32>
    %12 = tpu.matmul %10, %11, %cst_14 {dimension_numbers = #tpu.dot_dimension_numbers<[1], [0], [0], [1], [0, 0, 1, 1], [], []>} : vector<64x35xf32>, vector<35x112xf32>, vector<64x112xf32> -> vector<64x112xf32>
    %c0_15 = arith.constant 0 : index
    %c0_16 = arith.constant 0 : index
    %13 = vector.load %arg7[%c0_15, %c0_16] : memref<1x112xf32, #tpu.memory_space<vmem>>, vector<1x112xf32>
    %14 = vector.broadcast %13 : vector<1x112xf32> to vector<64x112xf32>
    %15 = arith.addf %12, %14 : vector<64x112xf32>
    %16 = vector.shape_cast %15 : vector<64x112xf32> to vector<8x8x112xf32>
    %c0_17 = arith.constant 0 : index
    %c0_18 = arith.constant 0 : index
    %c0_19 = arith.constant 0 : index
    %17 = vector.load %arg10[%c0_17, %c0_18, %c0_19] : memref<8x8x112xf32, #tpu.memory_space<vmem>>, vector<8x8x112xf32>
    tpu.vector_store %arg10[%c0_17, %c0_18, %c0_19], %16 {strides = array<i32>} : memref<8x8x112xf32, #tpu.memory_space<vmem>>, vector<8x8x112xf32>,
    %c0_20 = arith.constant 0 : index
    %c0_21 = arith.constant 0 : index
    %18 = vector.load %arg3[%c0_20, %c0_21] : memref<28x112xf32, #tpu.memory_space<vmem>>, vector<28x112xf32>
    %cst_22 = arith.constant 0.000000e+00 : f32
    %19 = vector.broadcast %cst_22 : f32 to vector<8x28xf32>
    %c0_i32 = arith.constant 0 : i32
    %c8_i32 = arith.constant 8 : i32
    %20 = arith.addi %c0_i32, %c8_i32 : i32
    %c1_i32 = arith.constant 1 : i32
    %21:2 = scf.for %arg11 = %c0_i32 to %20 step %c1_i32 iter_args(%arg12 = %19, %arg13 = %19) -> (vector<8x28xf32>, vector<8x28xf32>)  : i32 {
      %26 = arith.index_cast %arg11 : i32 to index
      %c0_31 = arith.constant 0 : index
      %c0_32 = arith.constant 0 : index
      %27 = vector.load %arg9[%26, %c0_31, %c0_32] : memref<8x8x112xf32, #tpu.memory_space<vmem>>, vector<1x8x112xf32>
      %28 = vector.shape_cast %27 : vector<1x8x112xf32> to vector<8x112xf32>
      %cst_33 = arith.constant dense<0.000000e+00> : vector<8x112xf32>
      %29 = tpu.matmul %arg12, %18, %cst_33 {dimension_numbers = #tpu.dot_dimension_numbers<[1], [0], [0], [1], [0, 0, 1, 1], [], []>} : vector<8x28xf32>, vector<28x112xf32>, vector<8x112xf32> -> vector<8x112xf32>
      %30 = arith.addf %28, %29 : vector<8x112xf32>
      %31 = vector.extract_strided_slice %30 {offsets = [0, 0], sizes = [8, 28], strides = [1, 1]} : vector<8x112xf32> to vector<8x28xf32>
      %cst_34 = arith.constant 0.000000e+00 : f32
      %32 = vector.broadcast %cst_34 : f32 to vector<8x28xf32>
      %33 = arith.subf %32, %31 : vector<8x28xf32>
      %34 = math.exp %33 : vector<8x28xf32>
      %cst_35 = arith.constant 1.000000e+00 : f32
      %35 = vector.broadcast %cst_35 : f32 to vector<8x28xf32>
      %36 = arith.addf %35, %34 : vector<8x28xf32>
      %37 = tpu.reciprocal %36 {approx = true} : vector<8x28xf32> -> vector<8x28xf32>
      %38 = vector.extract_strided_slice %30 {offsets = [0, 28], sizes = [8, 28], strides = [1, 1]} : vector<8x112xf32> to vector<8x28xf32>
      %cst_36 = arith.constant 0.000000e+00 : f32
      %39 = vector.broadcast %cst_36 : f32 to vector<8x28xf32>
      %40 = arith.subf %39, %38 : vector<8x28xf32>
      %41 = math.exp %40 : vector<8x28xf32>
      %cst_37 = arith.constant 1.000000e+00 : f32
      %42 = vector.broadcast %cst_37 : f32 to vector<8x28xf32>
      %43 = arith.addf %42, %41 : vector<8x28xf32>
      %44 = tpu.reciprocal %43 {approx = true} : vector<8x28xf32> -> vector<8x28xf32>
      %45 = vector.extract_strided_slice %30 {offsets = [0, 56], sizes = [8, 28], strides = [1, 1]} : vector<8x112xf32> to vector<8x28xf32>
      %46 = math.tanh %45 : vector<8x28xf32>
      %47 = vector.extract_strided_slice %30 {offsets = [0, 84], sizes = [8, 28], strides = [1, 1]} : vector<8x112xf32> to vector<8x28xf32>
      %cst_38 = arith.constant 0.000000e+00 : f32
      %48 = vector.broadcast %cst_38 : f32 to vector<8x28xf32>
      %49 = arith.subf %48, %47 : vector<8x28xf32>
      %50 = math.exp %49 : vector<8x28xf32>
      %cst_39 = arith.constant 1.000000e+00 : f32
      %51 = vector.broadcast %cst_39 : f32 to vector<8x28xf32>
      %52 = arith.addf %51, %50 : vector<8x28xf32>
      %53 = tpu.reciprocal %52 {approx = true} : vector<8x28xf32> -> vector<8x28xf32>
      %54 = arith.mulf %44, %arg13 : vector<8x28xf32>
      %55 = arith.mulf %37, %46 : vector<8x28xf32>
      %56 = arith.addf %54, %55 : vector<8x28xf32>
      %57 = math.tanh %56 : vector<8x28xf32>
      %58 = arith.mulf %53, %57 : vector<8x28xf32>
      %59 = arith.index_cast %arg11 : i32 to index
      %c0_40 = arith.constant 0 : index
      %c0_41 = arith.constant 0 : index
      %60 = vector.load %arg8[%59, %c0_40, %c0_41] : memref<8x8x56xf32, #tpu.memory_space<vmem>>, vector<1x8x28xf32>
      %61 = vector.shape_cast %60 : vector<1x8x28xf32> to vector<8x28xf32>
      %62 = vector.shape_cast %58 : vector<8x28xf32> to vector<1x8x28xf32>
      tpu.vector_store %arg8[%59, %c0_40, %c0_41], %62 {strides = array<i32>} : memref<8x8x56xf32, #tpu.memory_space<vmem>>, vector<1x8x28xf32>,
      scf.yield %58, %56 : vector<8x28xf32>, vector<8x28xf32>
    }
    %c8_i32_23 = arith.constant 8 : i32
    %c0_24 = arith.constant 0 : index
    %c0_25 = arith.constant 0 : index
    %22 = vector.load %arg6[%c0_24, %c0_25] : memref<28x112xf32, #tpu.memory_space<vmem>>, vector<28x112xf32>
    %cst_26 = arith.constant 0.000000e+00 : f32
    %23 = vector.broadcast %cst_26 : f32 to vector<8x28xf32>
    %c0_i32_27 = arith.constant 0 : i32
    %c8_i32_28 = arith.constant 8 : i32
    %24 = arith.addi %c0_i32_27, %c8_i32_28 : i32
    %c1_i32_29 = arith.constant 1 : i32
    %25:2 = scf.for %arg11 = %c0_i32_27 to %24 step %c1_i32_29 iter_args(%arg12 = %23, %arg13 = %23) -> (vector<8x28xf32>, vector<8x28xf32>)  : i32 {
      %c7_i32 = arith.constant 7 : i32
      %26 = arith.subi %c7_i32, %arg11 : i32
      %27 = arith.index_cast %26 : i32 to index
      %c0_31 = arith.constant 0 : index
      %c0_32 = arith.constant 0 : index
      %28 = vector.load %arg10[%27, %c0_31, %c0_32] : memref<8x8x112xf32, #tpu.memory_space<vmem>>, vector<1x8x112xf32>
      %29 = vector.shape_cast %28 : vector<1x8x112xf32> to vector<8x112xf32>
      %cst_33 = arith.constant dense<0.000000e+00> : vector<8x112xf32>
      %30 = tpu.matmul %arg12, %22, %cst_33 {dimension_numbers = #tpu.dot_dimension_numbers<[1], [0], [0], [1], [0, 0, 1, 1], [], []>} : vector<8x28xf32>, vector<28x112xf32>, vector<8x112xf32> -> vector<8x112xf32>
      %31 = arith.addf %29, %30 : vector<8x112xf32>
      %32 = vector.extract_strided_slice %31 {offsets = [0, 0], sizes = [8, 28], strides = [1, 1]} : vector<8x112xf32> to vector<8x28xf32>
      %cst_34 = arith.constant 0.000000e+00 : f32
      %33 = vector.broadcast %cst_34 : f32 to vector<8x28xf32>
      %34 = arith.subf %33, %32 : vector<8x28xf32>
      %35 = math.exp %34 : vector<8x28xf32>
      %cst_35 = arith.constant 1.000000e+00 : f32
      %36 = vector.broadcast %cst_35 : f32 to vector<8x28xf32>
      %37 = arith.addf %36, %35 : vector<8x28xf32>
      %38 = tpu.reciprocal %37 {approx = true} : vector<8x28xf32> -> vector<8x28xf32>
      %39 = vector.extract_strided_slice %31 {offsets = [0, 28], sizes = [8, 28], strides = [1, 1]} : vector<8x112xf32> to vector<8x28xf32>
      %cst_36 = arith.constant 0.000000e+00 : f32
      %40 = vector.broadcast %cst_36 : f32 to vector<8x28xf32>
      %41 = arith.subf %40, %39 : vector<8x28xf32>
      %42 = math.exp %41 : vector<8x28xf32>
      %cst_37 = arith.constant 1.000000e+00 : f32
      %43 = vector.broadcast %cst_37 : f32 to vector<8x28xf32>
      %44 = arith.addf %43, %42 : vector<8x28xf32>
      %45 = tpu.reciprocal %44 {approx = true} : vector<8x28xf32> -> vector<8x28xf32>
      %46 = vector.extract_strided_slice %31 {offsets = [0, 56], sizes = [8, 28], strides = [1, 1]} : vector<8x112xf32> to vector<8x28xf32>
      %47 = math.tanh %46 : vector<8x28xf32>
      %48 = vector.extract_strided_slice %31 {offsets = [0, 84], sizes = [8, 28], strides = [1, 1]} : vector<8x112xf32> to vector<8x28xf32>
      %cst_38 = arith.constant 0.000000e+00 : f32
      %49 = vector.broadcast %cst_38 : f32 to vector<8x28xf32>
      %50 = arith.subf %49, %48 : vector<8x28xf32>
      %51 = math.exp %50 : vector<8x28xf32>
      %cst_39 = arith.constant 1.000000e+00 : f32
      %52 = vector.broadcast %cst_39 : f32 to vector<8x28xf32>
      %53 = arith.addf %52, %51 : vector<8x28xf32>
      %54 = tpu.reciprocal %53 {approx = true} : vector<8x28xf32> -> vector<8x28xf32>
      %55 = arith.mulf %45, %arg13 : vector<8x28xf32>
      %56 = arith.mulf %38, %47 : vector<8x28xf32>
      %57 = arith.addf %55, %56 : vector<8x28xf32>
      %58 = math.tanh %57 : vector<8x28xf32>
      %59 = arith.mulf %54, %58 : vector<8x28xf32>
      %60 = arith.index_cast %26 : i32 to index
      %c0_40 = arith.constant 0 : index
      %c28 = arith.constant 28 : index
      %61 = vector.load %arg8[%60, %c0_40, %c28] : memref<8x8x56xf32, #tpu.memory_space<vmem>>, vector<1x8x28xf32>
      %62 = vector.shape_cast %61 : vector<1x8x28xf32> to vector<8x28xf32>
      %63 = vector.shape_cast %59 : vector<8x28xf32> to vector<1x8x28xf32>
      tpu.vector_store %arg8[%60, %c0_40, %c28], %63 {strides = array<i32>} : memref<8x8x56xf32, #tpu.memory_space<vmem>>, vector<1x8x28xf32>,
      scf.yield %59, %57 : vector<8x28xf32>, vector<8x28xf32>
    }
    %c8_i32_30 = arith.constant 8 : i32
    return
  }
  func.func @transform_0(%arg0: i32) -> (i32, i32, i32) {
    %c0_i32 = arith.constant 0 : i32
    %c0_i32_0 = arith.constant 0 : i32
    %c0_i32_1 = arith.constant 0 : i32
    return %c0_i32, %arg0, %c0_i32_0 : i32, i32, i32
  }
  func.func @transform_1(%arg0: i32) -> (i32, i32) {
    %c0_i32 = arith.constant 0 : i32
    %c0_i32_0 = arith.constant 0 : i32
    %c0_i32_1 = arith.constant 0 : i32
    return %c0_i32, %c0_i32_0 : i32, i32
  }
  func.func @transform_2(%arg0: i32) -> (i32, i32) {
    %c0_i32 = arith.constant 0 : i32
    %c0_i32_0 = arith.constant 0 : i32
    %c0_i32_1 = arith.constant 0 : i32
    return %c0_i32, %c0_i32_0 : i32, i32
  }
  func.func @transform_3(%arg0: i32) -> (i32, i32) {
    %c0_i32 = arith.constant 0 : i32
    %c0_i32_0 = arith.constant 0 : i32
    %c0_i32_1 = arith.constant 0 : i32
    return %c0_i32, %c0_i32_0 : i32, i32
  }
  func.func @transform_4(%arg0: i32) -> (i32, i32) {
    %c0_i32 = arith.constant 0 : i32
    %c0_i32_0 = arith.constant 0 : i32
    %c0_i32_1 = arith.constant 0 : i32
    return %c0_i32, %c0_i32_0 : i32, i32
  }
  func.func @transform_5(%arg0: i32) -> (i32, i32) {
    %c0_i32 = arith.constant 0 : i32
    %c0_i32_0 = arith.constant 0 : i32
    %c0_i32_1 = arith.constant 0 : i32
    return %c0_i32, %c0_i32_0 : i32, i32
  }
  func.func @transform_6(%arg0: i32) -> (i32, i32) {
    %c0_i32 = arith.constant 0 : i32
    %c0_i32_0 = arith.constant 0 : i32
    %c0_i32_1 = arith.constant 0 : i32
    return %c0_i32, %c0_i32_0 : i32, i32
  }
  func.func @transform_7(%arg0: i32) -> (i32, i32, i32) {
    %c0_i32 = arith.constant 0 : i32
    %c0_i32_0 = arith.constant 0 : i32
    %c0_i32_1 = arith.constant 0 : i32
    return %c0_i32, %arg0, %c0_i32_0 : i32, i32, i32
  }
}

</mosaic_0001>

<llo_original>
// kernel: forward.4
$region0: #{forward.4}
  #allocation0 [shape = 'u32[]', space=smem, size = 0x4, offset = 0x4, fixed_abs, tag = 'smem constant byte address 0x4 - core index']
  #allocation1 [shape = 'u32[144,128]{1,0:T(1,128)}', space=vmem, size = 0x12000, scoped, tag = 'internal scratch']
  #allocation2 [shape = 'f32[8,8,112]{2,1,0:T(8,128)}', space=vmem, size = 0x8000, scoped, tag = 'scratch operand']
  #allocation3 [shape = 'f32[8,8,112]{2,1,0:T(8,128)}', space=vmem, size = 0x8000, scoped, tag = 'scratch operand']
  %s0 = inlined_call_operand.vmem [shape: f32[8,8,35], index: 0, kind: input, shape index: {}]
  %s1 = inlined_call_operand.vmem [shape: f32[35,112], index: 1, kind: input, shape index: {}]
  %s2 = inlined_call_operand.vmem [shape: f32[28,112], index: 2, kind: input, shape index: {}]
  %s3 = inlined_call_operand.vmem [shape: f32[1,112], index: 3, kind: input, shape index: {}]
  %s4 = inlined_call_operand.vmem [shape: f32[35,112], index: 4, kind: input, shape index: {}]
  %s5 = inlined_call_operand.vmem [shape: f32[28,112], index: 5, kind: input, shape index: {}]
  %s6 = inlined_call_operand.vmem [shape: f32[1,112], index: 6, kind: input, shape index: {}]
  %s7 = inlined_call_operand.vmem [shape: f32[8,8,56], index: 7, kind: output, shape index: {}]
  %s8 = sld [smem:[#allocation0]]
  $region52: #{forward.4} parent=0
    _
  %s10 = ssub.s32 1, %s8
  %s11 = scalar_select 0, %s10, %s8
  // Predicated region
  $region2: #{forward.4} parent=0 // pred_check
    _
  $region3: #{forward.4} parent=0 // pred_check_branch
    %13 = sbr.rel (0) target = $region5
  $region4: #{forward.4} parent=0 // pred_region
    _
  $region5: #{forward.4} parent=0 // pred_fallthru
    _
  // Predicated region
  $region6: #{forward.4} parent=0 // pred_check
    _
  $region7: #{forward.4} parent=0 // pred_check_branch
    %15 = sbr.rel (0) target = $region9
  $region8: #{forward.4} parent=0 // pred_region
    _
  $region9: #{forward.4} parent=0 // pred_fallthru
    _
  // Predicated region
  $region10: #{forward.4} parent=0 // pred_check
    _
  $region11: #{forward.4} parent=0 // pred_check_branch
    %17 = sbr.rel (0) target = $region13
  $region12: #{forward.4} parent=0 // pred_region
    _
  $region13: #{forward.4} parent=0 // pred_fallthru
    _
  // Predicated region
  $region14: #{forward.4} parent=0 // pred_check
    _
  $region15: #{forward.4} parent=0 // pred_check_branch
    %19 = sbr.rel (0) target = $region17
  $region16: #{forward.4} parent=0 // pred_region
    _
  $region17: #{forward.4} parent=0 // pred_fallthru
    _
  // Predicated region
  $region18: #{forward.4} parent=0 // pred_check
    _
  $region19: #{forward.4} parent=0 // pred_check_branch
    %21 = sbr.rel (0) target = $region21
  $region20: #{forward.4} parent=0 // pred_region
    _
  $region21: #{forward.4} parent=0 // pred_fallthru
    _
  // Predicated region
  $region22: #{forward.4} parent=0 // pred_check
    _
  $region23: #{forward.4} parent=0 // pred_check_branch
    %23 = sbr.rel (0) target = $region25
  $region24: #{forward.4} parent=0 // pred_region
    _
  $region25: #{forward.4} parent=0 // pred_fallthru
    _
  // Predicated region
  $region26: #{forward.4} parent=0 // pred_check
    _
  $region27: #{forward.4} parent=0 // pred_check_branch
    %25 = sbr.rel (0) target = $region29
  $region28: #{forward.4} parent=0 // pred_region
    _
  $region29: #{forward.4} parent=0 // pred_fallthru
    _
  %v26 = vld [vmem:[%s0] sm:$0xff]
  %v27 = vld [vmem:[%s0 + $0x8] sm:$0xff]
  %v28 = vld [vmem:[%s0 + $0x10] sm:$0xff]
  %v29 = vld [vmem:[%s0 + $0x18] sm:$0xff]
  %v30 = vld [vmem:[%s0 + $0x20] sm:$0xff]
  %v31 = vld [vmem:[%s0 + $0x28] sm:$0xff]
  %v32 = vld [vmem:[%s0 + $0x30] sm:$0xff]
  %v33 = vld [vmem:[%s0 + $0x38] sm:$0xff]
  %v34 = vld [vmem:[%s1] sm:$0xff]
  %v35 = vld [vmem:[%s1 + $0x8] sm:$0xff]
  %v36 = vld [vmem:[%s1 + $0x10] sm:$0xff]
  %v37 = vld [vmem:[%s1 + $0x18] sm:$0xff]
  %v38 = vld [vmem:[%s1 + $0x20] sm:$0x7]
  %v39 = vld [vmem:[%s3] sm:$0x1]
  %v41 = vlaneseq
  %v42 = vshrl.u32 %v41, 7
  %v43 = vsub.s32 0, %v42
  %v44 = vrot.slane %v39, %v43
  %vm46 = vcmask 285696
  %v48 = vsel %vm46, %v26, 0
  %v51 = vsel %vm46, %v27, 0
  %v54 = vsel %vm46, %v28, 0
  %v57 = vsel %vm46, %v29, 0
  %v60 = vsel %vm46, %v30, 0
  %v63 = vsel %vm46, %v31, 0
  %v66 = vsel %vm46, %v32, 0
  %v69 = vsel %vm46, %v33, 0
  %vm71 = vcmask 1042432
  %v73 = vsel %vm71, %v38, 0
  %75 = vmatprep.subr.mxu0 0.0
  %76 = vmatpush1.msra.mxu0 %v34
  %77 = vmatprep.subr.mxu0 0.0
  %78 = vmatpush1.msra.mxu0 %v35
  %79 = vmatprep.subr.mxu0 0.0
  %80 = vmatpush1.msra.mxu0 %v36
  %81 = vmatprep.subr.mxu0 0.0
  %82 = vmatpush1.msra.mxu0 %v37
  %83 = vmatprep.subr.mxu0 0.0
  %84 = vmatpush1.msra.mxu0 %v73
  %85 = vmatprep.subr.mxu0 0.0
  %86 = vmatpush1.msra.mxu0 0.0
  %87 = vmatprep.subr.mxu0 0.0
  %88 = vmatpush1.msra.mxu0 0.0
  %89 = vmatprep.subr.mxu0 0.0
  %90 = vmatpush1.msra.mxu0 0.0
  %91 = vmatprep.subr.mxu0 0.0
  %92 = vmatpush1.msra.mxu0 0.0
  %93 = vmatprep.subr.mxu0 0.0
  %94 = vmatpush1.msra.mxu0 0.0
  %95 = vmatprep.subr.mxu0 0.0
  %96 = vmatpush1.msra.mxu0 0.0
  %97 = vmatprep.subr.mxu0 0.0
  %98 = vmatpush1.msra.mxu0 0.0
  %99 = vmatprep.subr.mxu0 0.0
  %100 = vmatpush1.msra.mxu0 0.0
  %101 = vmatprep.subr.mxu0 0.0
  %102 = vmatpush1.msra.mxu0 0.0
  %103 = vmatprep.subr.mxu0 0.0
  %104 = vmatpush1.msra.mxu0 0.0
  %105 = vmatprep.subr.mxu0 0.0
  %106 = vmatpush1.msra.mxu0 0.0
  %107 = vmatprep.subr.mxu0 0.0
  %108 = vmatpush1.msra.mxu0 0.0
  %109 = vmatprep.subr.mxu0 0.0
  %110 = vmatpush1.msra.mxu0 0.0
  %111 = vmatprep.subr.mxu0 0.0
  %112 = vmatpush1.msra.mxu0 0.0
  %113 = vmatprep.subr.mxu0 0.0
  %114 = vmatpush1.msra.mxu0 0.0
  %115 = vmatprep.subr.mxu0 0.0
  %116 = vmatpush1.msra.mxu0 0.0
  %117 = vmatprep.subr.mxu0 0.0
  %118 = vmatpush1.msra.mxu0 0.0
  %119 = vmatprep.subr.mxu0 0.0
  %120 = vmatpush1.msra.mxu0 0.0
  %121 = vmatprep.subr.mxu0 0.0
  %122 = vmatpush1.msra.mxu0 0.0
  %123 = vmatprep.subr.mxu0 0.0
  %124 = vmatpush1.msra.mxu0 0.0
  %125 = vmatprep.subr.mxu0 0.0
  %126 = vmatpush1.msra.mxu0 0.0
  %127 = vmatprep.subr.mxu0 0.0
  %128 = vmatpush1.msra.mxu0 0.0
  %129 = vmatprep.subr.mxu0 0.0
  %130 = vmatpush1.msra.mxu0 0.0
  %131 = vmatprep.subr.mxu0 0.0
  %132 = vmatpush1.msra.mxu0 0.0
  %133 = vmatprep.subr.mxu0 0.0
  %134 = vmatpush1.msra.mxu0 0.0
  %135 = vmatprep.subr.mxu0 0.0
  %136 = vmatpush1.msra.mxu0 0.0
  %137 = vmatprep.subr.mxu0 0.0
  %138 = vmatpush1.msra.mxu0 0.0
  %139 = vmatprep.mubr.f32.mxu0 0.0
  %140 = vmatmul.mubr.f32.gmra.mrb[0].mxu0 %v48
  %v141 = vpop.f32.mrb[0].mxu0
  %v142 = vadd.f32 %v44, %v141
  %v143 = vpop.f32.mrb[0].mxu0
  %144 = vmatprep.mubr.f32.mxu0 0.0
  %145 = vmatmul.mubr.f32.gmra.mrb[0].mxu0 %v51
  %v146 = vpop.f32.mrb[0].mxu0
  %v147 = vadd.f32 %v44, %v146
  %v148 = vpop.f32.mrb[0].mxu0
  %149 = vmatprep.mubr.f32.mxu0 0.0
  %150 = vmatmul.mubr.f32.gmra.mrb[0].mxu0 %v54
  %v151 = vpop.f32.mrb[0].mxu0
  %v152 = vadd.f32 %v44, %v151
  %v153 = vpop.f32.mrb[0].mxu0
  %154 = vmatprep.mubr.f32.mxu0 0.0
  %155 = vmatmul.mubr.f32.gmra.mrb[0].mxu0 %v57
  %v156 = vpop.f32.mrb[0].mxu0
  %v157 = vadd.f32 %v44, %v156
  %v158 = vpop.f32.mrb[0].mxu0
  %159 = vmatprep.mubr.f32.mxu0 0.0
  %160 = vmatmul.mubr.f32.gmra.mrb[0].mxu0 %v60
  %v161 = vpop.f32.mrb[0].mxu0
  %v162 = vadd.f32 %v44, %v161
  %v163 = vpop.f32.mrb[0].mxu0
  %164 = vmatprep.mubr.f32.mxu0 0.0
  %165 = vmatmul.mubr.f32.gmra.mrb[0].mxu0 %v63
  %v166 = vpop.f32.mrb[0].mxu0
  %v167 = vadd.f32 %v44, %v166
  %v168 = vpop.f32.mrb[0].mxu0
  %169 = vmatprep.mubr.f32.mxu0 0.0
  %170 = vmatmul.mubr.f32.gmra.mrb[0].mxu0 %v66
  %v171 = vpop.f32.mrb[0].mxu0
  %v172 = vadd.f32 %v44, %v171
  %v173 = vpop.f32.mrb[0].mxu0
  %174 = vmatprep.mubr.f32.mxu0 0.0
  %175 = vmatmul.mubr.f32.gmra.mrb[0].mxu0 %v69
  %v176 = vpop.f32.mrb[0].mxu0
  %v177 = vadd.f32 %v44, %v176
  %v178 = vpop.f32.mrb[0].mxu0
  %179 = vdwg.mxu0
  %vm180 = vcmask 916480
  %181 = vst.msk [vmem:[#allocation2] sm:$0xff] %vm180, %v142
  %182 = vst.msk [vmem:[#allocation2 + $0x8] sm:$0xff] %vm180, %v147
  %183 = vst.msk [vmem:[#allocation2 + $0x10] sm:$0xff] %vm180, %v152
  %184 = vst.msk [vmem:[#allocation2 + $0x18] sm:$0xff] %vm180, %v157
  %185 = vst.msk [vmem:[#allocation2 + $0x20] sm:$0xff] %vm180, %v162
  %186 = vst.msk [vmem:[#allocation2 + $0x28] sm:$0xff] %vm180, %v167
  %187 = vst.msk [vmem:[#allocation2 + $0x30] sm:$0xff] %vm180, %v172
  %188 = vst.msk [vmem:[#allocation2 + $0x38] sm:$0xff] %vm180, %v177
  %v189 = vld [vmem:[%s0] sm:$0xff]
  %v190 = vld [vmem:[%s0 + $0x8] sm:$0xff]
  %v191 = vld [vmem:[%s0 + $0x10] sm:$0xff]
  %v192 = vld [vmem:[%s0 + $0x18] sm:$0xff]
  %v193 = vld [vmem:[%s0 + $0x20] sm:$0xff]
  %v194 = vld [vmem:[%s0 + $0x28] sm:$0xff]
  %v195 = vld [vmem:[%s0 + $0x30] sm:$0xff]
  %v196 = vld [vmem:[%s0 + $0x38] sm:$0xff]
  %v197 = vld [vmem:[%s4] sm:$0xff]
  %v198 = vld [vmem:[%s4 + $0x8] sm:$0xff]
  %v199 = vld [vmem:[%s4 + $0x10] sm:$0xff]
  %v200 = vld [vmem:[%s4 + $0x18] sm:$0xff]
  %v201 = vld [vmem:[%s4 + $0x20] sm:$0x7]
  %v202 = vld [vmem:[%s6] sm:$0x1]
  %v204 = vlaneseq
  %v205 = vshrl.u32 %v204, 7
  %v206 = vsub.s32 0, %v205
  %v207 = vrot.slane %v202, %v206
  %v210 = vsel %vm46, %v189, 0
  %v213 = vsel %vm46, %v190, 0
  %v216 = vsel %vm46, %v191, 0
  %v219 = vsel %vm46, %v192, 0
  %v222 = vsel %vm46, %v193, 0
  %v225 = vsel %vm46, %v194, 0
  %v228 = vsel %vm46, %v195, 0
  %v231 = vsel %vm46, %v196, 0
  %v234 = vsel %vm71, %v201, 0
  %236 = vmatprep.subr.mxu0 0.0
  %237 = vmatpush1.msra.mxu0 %v197
  %238 = vmatprep.subr.mxu0 0.0
  %239 = vmatpush1.msra.mxu0 %v198
  %240 = vmatprep.subr.mxu0 0.0
  %241 = vmatpush1.msra.mxu0 %v199
  %242 = vmatprep.subr.mxu0 0.0
  %243 = vmatpush1.msra.mxu0 %v200
  %244 = vmatprep.subr.mxu0 0.0
  %245 = vmatpush1.msra.mxu0 %v234
  %246 = vmatprep.subr.mxu0 0.0
  %247 = vmatpush1.msra.mxu0 0.0
  %248 = vmatprep.subr.mxu0 0.0
  %249 = vmatpush1.msra.mxu0 0.0
  %250 = vmatprep.subr.mxu0 0.0
  %251 = vmatpush1.msra.mxu0 0.0
  %252 = vmatprep.subr.mxu0 0.0
  %253 = vmatpush1.msra.mxu0 0.0
  %254 = vmatprep.subr.mxu0 0.0
  %255 = vmatpush1.msra.mxu0 0.0
  %256 = vmatprep.subr.mxu0 0.0
  %257 = vmatpush1.msra.mxu0 0.0
  %258 = vmatprep.subr.mxu0 0.0
  %259 = vmatpush1.msra.mxu0 0.0
  %260 = vmatprep.subr.mxu0 0.0
  %261 = vmatpush1.msra.mxu0 0.0
  %262 = vmatprep.subr.mxu0 0.0
  %263 = vmatpush1.msra.mxu0 0.0
  %264 = vmatprep.subr.mxu0 0.0
  %265 = vmatpush1.msra.mxu0 0.0
  %266 = vmatprep.subr.mxu0 0.0
  %267 = vmatpush1.msra.mxu0 0.0
  %268 = vmatprep.subr.mxu0 0.0
  %269 = vmatpush1.msra.mxu0 0.0
  %270 = vmatprep.subr.mxu0 0.0
  %271 = vmatpush1.msra.mxu0 0.0
  %272 = vmatprep.subr.mxu0 0.0
  %273 = vmatpush1.msra.mxu0 0.0
  %274 = vmatprep.subr.mxu0 0.0
  %275 = vmatpush1.msra.mxu0 0.0
  %276 = vmatprep.subr.mxu0 0.0
  %277 = vmatpush1.msra.mxu0 0.0
  %278 = vmatprep.subr.mxu0 0.0
  %279 = vmatpush1.msra.mxu0 0.0
  %280 = vmatprep.subr.mxu0 0.0
  %281 = vmatpush1.msra.mxu0 0.0
  %282 = vmatprep.subr.mxu0 0.0
  %283 = vmatpush1.msra.mxu0 0.0
  %284 = vmatprep.subr.mxu0 0.0
  %285 = vmatpush1.msra.mxu0 0.0
  %286 = vmatprep.subr.mxu0 0.0
  %287 = vmatpush1.msra.mxu0 0.0
  %288 = vmatprep.subr.mxu0 0.0
  %289 = vmatpush1.msra.mxu0 0.0
  %290 = vmatprep.subr.mxu0 0.0
  %291 = vmatpush1.msra.mxu0 0.0
  %292 = vmatprep.subr.mxu0 0.0
  %293 = vmatpush1.msra.mxu0 0.0
  %294 = vmatprep.subr.mxu0 0.0
  %295 = vmatpush1.msra.mxu0 0.0
  %296 = vmatprep.subr.mxu0 0.0
  %297 = vmatpush1.msra.mxu0 0.0
  %298 = vmatprep.subr.mxu0 0.0
  %299 = vmatpush1.msra.mxu0 0.0
  %300 = vmatprep.mubr.f32.mxu0 0.0
  %301 = vmatmul.mubr.f32.gmra.mrb[0].mxu0 %v210
  %v302 = vpop.f32.mrb[0].mxu0
  %v303 = vadd.f32 %v207, %v302
  %v304 = vpop.f32.mrb[0].mxu0
  %305 = vmatprep.mubr.f32.mxu0 0.0
  %306 = vmatmul.mubr.f32.gmra.mrb[0].mxu0 %v213
  %v307 = vpop.f32.mrb[0].mxu0
  %v308 = vadd.f32 %v207, %v307
  %v309 = vpop.f32.mrb[0].mxu0
  %310 = vmatprep.mubr.f32.mxu0 0.0
  %311 = vmatmul.mubr.f32.gmra.mrb[0].mxu0 %v216
  %v312 = vpop.f32.mrb[0].mxu0
  %v313 = vadd.f32 %v207, %v312
  %v314 = vpop.f32.mrb[0].mxu0
  %315 = vmatprep.mubr.f32.mxu0 0.0
  %316 = vmatmul.mubr.f32.gmra.mrb[0].mxu0 %v219
  %v317 = vpop.f32.mrb[0].mxu0
  %v318 = vadd.f32 %v207, %v317
  %v319 = vpop.f32.mrb[0].mxu0
  %320 = vmatprep.mubr.f32.mxu0 0.0
  %321 = vmatmul.mubr.f32.gmra.mrb[0].mxu0 %v222
  %v322 = vpop.f32.mrb[0].mxu0
  %v323 = vadd.f32 %v207, %v322
  %v324 = vpop.f32.mrb[0].mxu0
  %325 = vmatprep.mubr.f32.mxu0 0.0
  %326 = vmatmul.mubr.f32.gmra.mrb[0].mxu0 %v225
  %v327 = vpop.f32.mrb[0].mxu0
  %v328 = vadd.f32 %v207, %v327
  %v329 = vpop.f32.mrb[0].mxu0
  %330 = vmatprep.mubr.f32.mxu0 0.0
  %331 = vmatmul.mubr.f32.gmra.mrb[0].mxu0 %v228
  %v332 = vpop.f32.mrb[0].mxu0
  %v333 = vadd.f32 %v207, %v332
  %v334 = vpop.f32.mrb[0].mxu0
  %335 = vmatprep.mubr.f32.mxu0 0.0
  %336 = vmatmul.mubr.f32.gmra.mrb[0].mxu0 %v231
  %v337 = vpop.f32.mrb[0].mxu0
  %v338 = vadd.f32 %v207, %v337
  %v339 = vpop.f32.mrb[0].mxu0
  %340 = vdwg.mxu0
  %341 = vst.msk [vmem:[#allocation3] sm:$0xff] %vm180, %v303
  %342 = vst.msk [vmem:[#allocation3 + $0x8] sm:$0xff] %vm180, %v308
  %343 = vst.msk [vmem:[#allocation3 + $0x10] sm:$0xff] %vm180, %v313
  %344 = vst.msk [vmem:[#allocation3 + $0x18] sm:$0xff] %vm180, %v318
  %345 = vst.msk [vmem:[#allocation3 + $0x20] sm:$0xff] %vm180, %v323
  %346 = vst.msk [vmem:[#allocation3 + $0x28] sm:$0xff] %vm180, %v328
  %347 = vst.msk [vmem:[#allocation3 + $0x30] sm:$0xff] %vm180, %v333
  %348 = vst.msk [vmem:[#allocation3 + $0x38] sm:$0xff] %vm180, %v338
  %v349 = vld [vmem:[%s2] sm:$0xff]
  %v350 = vld [vmem:[%s2 + $0x8] sm:$0xff]
  %v351 = vld [vmem:[%s2 + $0x10] sm:$0xff]
  %v352 = vld [vmem:[%s2 + $0x18] sm:$0xf]
  loop: start=0, step=1, limit=8
  $region30: #{forward.4} parent=0 // loop_pre_header
    _
  $region31: #{forward.4} parent=0 // loop_header
    %s354 = sphi 0, %s358
    %p355 = scmp.ge.s32.totalorder %s354, 8
    %v359 = vphi 0.0, %v467
    %v360 = vphi 0.0, %v461
  $region32: #{forward.4} parent=0 // loop_header_branch
    %357 = sbr.rel (%p355) target = $region36
  $region33: #{forward.4} parent=0 // loop_body
    %s361 = smul.u32 %s354, 8
    %s362 = scalar_lea.vmem [#allocation2], %s361
    %v363 = vld [vmem:[%s362] sm:$0xff]
    %365 = vrot.lane.b32.xlu0 %v359, 44
    %v366 = vpop.permute.xlu0 %365
    %vm367 = vcmask 228352
    %v368 = vsel %vm367, %v366, 0
    %vm370 = vcmask 1043456
    %v372 = vsel %vm370, %v352, 0
    %374 = vmatprep.subr.mxu0 0.0
    %375 = vmatpush1.msra.mxu0 %v349
    %376 = vmatprep.subr.mxu0 0.0
    %377 = vmatpush1.msra.mxu0 %v350
    %378 = vmatprep.subr.mxu0 0.0
    %379 = vmatpush1.msra.mxu0 %v351
    %380 = vmatprep.subr.mxu0 0.0
    %381 = vmatpush1.msra.mxu0 %v372
    %382 = vmatprep.subr.mxu0 0.0
    %383 = vmatpush1.msra.mxu0 0.0
    %384 = vmatprep.subr.mxu0 0.0
    %385 = vmatpush1.msra.mxu0 0.0
    %386 = vmatprep.subr.mxu0 0.0
    %387 = vmatpush1.msra.mxu0 0.0
    %388 = vmatprep.subr.mxu0 0.0
    %389 = vmatpush1.msra.mxu0 0.0
    %390 = vmatprep.subr.mxu0 0.0
    %391 = vmatpush1.msra.mxu0 0.0
    %392 = vmatprep.subr.mxu0 0.0
    %393 = vmatpush1.msra.mxu0 0.0
    %394 = vmatprep.subr.mxu0 0.0
    %395 = vmatpush1.msra.mxu0 0.0
    %396 = vmatprep.subr.mxu0 0.0
    %397 = vmatpush1.msra.mxu0 0.0
    %398 = vmatprep.subr.mxu0 0.0
    %399 = vmatpush1.msra.mxu0 0.0
    %400 = vmatprep.subr.mxu0 0.0
    %401 = vmatpush1.msra.mxu0 0.0
    %402 = vmatprep.subr.mxu0 0.0
    %403 = vmatpush1.msra.mxu0 0.0
    %404 = vmatprep.subr.mxu0 0.0
    %405 = vmatpush1.msra.mxu0 0.0
    %406 = vmatprep.subr.mxu0 0.0
    %407 = vmatpush1.msra.mxu0 0.0
    %408 = vmatprep.subr.mxu0 0.0
    %409 = vmatpush1.msra.mxu0 0.0
    %410 = vmatprep.subr.mxu0 0.0
    %411 = vmatpush1.msra.mxu0 0.0
    %412 = vmatprep.subr.mxu0 0.0
    %413 = vmatpush1.msra.mxu0 0.0
    %414 = vmatprep.subr.mxu0 0.0
    %415 = vmatpush1.msra.mxu0 0.0
    %416 = vmatprep.subr.mxu0 0.0
    %417 = vmatpush1.msra.mxu0 0.0
    %418 = vmatprep.subr.mxu0 0.0
    %419 = vmatpush1.msra.mxu0 0.0
    %420 = vmatprep.subr.mxu0 0.0
    %421 = vmatpush1.msra.mxu0 0.0
    %422 = vmatprep.subr.mxu0 0.0
    %423 = vmatpush1.msra.mxu0 0.0
    %424 = vmatprep.subr.mxu0 0.0
    %425 = vmatpush1.msra.mxu0 0.0
    %426 = vmatprep.subr.mxu0 0.0
    %427 = vmatpush1.msra.mxu0 0.0
    %428 = vmatprep.subr.mxu0 0.0
    %429 = vmatpush1.msra.mxu0 0.0
    %430 = vmatprep.subr.mxu0 0.0
    %431 = vmatpush1.msra.mxu0 0.0
    %432 = vmatprep.subr.mxu0 0.0
    %433 = vmatpush1.msra.mxu0 0.0
    %434 = vmatprep.subr.mxu0 0.0
    %435 = vmatpush1.msra.mxu0 0.0
    %436 = vmatprep.subr.mxu0 0.0
    %437 = vmatpush1.msra.mxu0 0.0
    %438 = vmatprep.mubr.f32.mxu0 0.0
    %439 = vmatmul.mubr.f32.gmra.mrb[0].mxu0 %v368
    %v440 = vpop.f32.mrb[0].mxu0
    %v441 = vadd.f32 0.0, %v440
    %v442 = vpop.f32.mrb[0].mxu0
    %443 = vdwg.mxu0
    %v444 = vadd.f32 %v363, %v441
    %v445 = vsub.f32 0.0, %v444
    %v446 = vmul.f32 %v445, 1.442695
    %v447 = vpow.pop %v446
    %v448 = vadd.f32 %v447, 1.0
    %v449 = vrcp.pop %v448
    %v450 = vtanh.pop %v444
    %v451 = vmul.f32 %v449, %v360
    %453 = vrot.lane.b32.xlu0 %v450, 72
    %v454 = vpop.permute.xlu0 %453
    %v456 = vmul.f32 %v449, %v454
    %458 = vrot.lane.b32.xlu0 %v456, 28
    %v459 = vpop.permute.xlu0 %458
    %v461 = vadd.f32 %v451, %v459
    %v462 = vtanh.pop %v461
    %464 = vrot.lane.b32.xlu0 %v462, 56
    %v465 = vpop.permute.xlu0 %464
    %v467 = vmul.f32 %v449, %v465
    %469 = vrot.lane.b32.xlu0 %v467, 44
    %v470 = vpop.permute.xlu0 %469
    %s472 = scalar_lea.vmem %s7, %s361
    %473 = vst.msk [vmem:[%s472] sm:$0xff] %vm367, %v470
  $region34: #{forward.4} parent=0 // loop_footer
    %s358 = sadd.s32 1, %s354
  $region35: #{forward.4} parent=0 // loop_footer_branch
    %353 = sbr.rel target = $region31
  $region36: #{forward.4} parent=0 // loop_exit
    _
  %v474 = vld [vmem:[%s5] sm:$0xff]
  %v475 = vld [vmem:[%s5 + $0x8] sm:$0xff]
  %v476 = vld [vmem:[%s5 + $0x10] sm:$0xff]
  %v477 = vld [vmem:[%s5 + $0x18] sm:$0xf]
  loop: start=0, step=1, limit=8
  $region37: #{forward.4} parent=0 // loop_pre_header
    _
  $region38: #{forward.4} parent=0 // loop_header
    %s479 = sphi 0, %s483
    %p480 = scmp.ge.s32.totalorder %s479, 8
    %v484 = vphi 0.0, %v593
    %v485 = vphi 0.0, %v587
  $region39: #{forward.4} parent=0 // loop_header_branch
    %482 = sbr.rel (%p480) target = $region43
  $region40: #{forward.4} parent=0 // loop_body
    %s486 = ssub.s32 7, %s479
    %s487 = smul.u32 %s486, 8
    %s488 = scalar_lea.vmem [#allocation3], %s487
    %v489 = vld [vmem:[%s488] sm:$0xff]
    %491 = vrot.lane.b32.xlu0 %v484, 44
    %v492 = vpop.permute.xlu0 %491
    %vm493 = vcmask 228352
    %v494 = vsel %vm493, %v492, 0
    %vm496 = vcmask 1043456
    %v498 = vsel %vm496, %v477, 0
    %500 = vmatprep.subr.mxu0 0.0
    %501 = vmatpush1.msra.mxu0 %v474
    %502 = vmatprep.subr.mxu0 0.0
    %503 = vmatpush1.msra.mxu0 %v475
    %504 = vmatprep.subr.mxu0 0.0
    %505 = vmatpush1.msra.mxu0 %v476
    %506 = vmatprep.subr.mxu0 0.0
    %507 = vmatpush1.msra.mxu0 %v498
    %508 = vmatprep.subr.mxu0 0.0
    %509 = vmatpush1.msra.mxu0 0.0
    %510 = vmatprep.subr.mxu0 0.0
    %511 = vmatpush1.msra.mxu0 0.0
    %512 = vmatprep.subr.mxu0 0.0
    %513 = vmatpush1.msra.mxu0 0.0
    %514 = vmatprep.subr.mxu0 0.0
    %515 = vmatpush1.msra.mxu0 0.0
    %516 = vmatprep.subr.mxu0 0.0
    %517 = vmatpush1.msra.mxu0 0.0
    %518 = vmatprep.subr.mxu0 0.0
    %519 = vmatpush1.msra.mxu0 0.0
    %520 = vmatprep.subr.mxu0 0.0
    %521 = vmatpush1.msra.mxu0 0.0
    %522 = vmatprep.subr.mxu0 0.0
    %523 = vmatpush1.msra.mxu0 0.0
    %524 = vmatprep.subr.mxu0 0.0
    %525 = vmatpush1.msra.mxu0 0.0
    %526 = vmatprep.subr.mxu0 0.0
    %527 = vmatpush1.msra.mxu0 0.0
    %528 = vmatprep.subr.mxu0 0.0
    %529 = vmatpush1.msra.mxu0 0.0
    %530 = vmatprep.subr.mxu0 0.0
    %531 = vmatpush1.msra.mxu0 0.0
    %532 = vmatprep.subr.mxu0 0.0
    %533 = vmatpush1.msra.mxu0 0.0
    %534 = vmatprep.subr.mxu0 0.0
    %535 = vmatpush1.msra.mxu0 0.0
    %536 = vmatprep.subr.mxu0 0.0
    %537 = vmatpush1.msra.mxu0 0.0
    %538 = vmatprep.subr.mxu0 0.0
    %539 = vmatpush1.msra.mxu0 0.0
    %540 = vmatprep.subr.mxu0 0.0
    %541 = vmatpush1.msra.mxu0 0.0
    %542 = vmatprep.subr.mxu0 0.0
    %543 = vmatpush1.msra.mxu0 0.0
    %544 = vmatprep.subr.mxu0 0.0
    %545 = vmatpush1.msra.mxu0 0.0
    %546 = vmatprep.subr.mxu0 0.0
    %547 = vmatpush1.msra.mxu0 0.0
    %548 = vmatprep.subr.mxu0 0.0
    %549 = vmatpush1.msra.mxu0 0.0
    %550 = vmatprep.subr.mxu0 0.0
    %551 = vmatpush1.msra.mxu0 0.0
    %552 = vmatprep.subr.mxu0 0.0
    %553 = vmatpush1.msra.mxu0 0.0
    %554 = vmatprep.subr.mxu0 0.0
    %555 = vmatpush1.msra.mxu0 0.0
    %556 = vmatprep.subr.mxu0 0.0
    %557 = vmatpush1.msra.mxu0 0.0
    %558 = vmatprep.subr.mxu0 0.0
    %559 = vmatpush1.msra.mxu0 0.0
    %560 = vmatprep.subr.mxu0 0.0
    %561 = vmatpush1.msra.mxu0 0.0
    %562 = vmatprep.subr.mxu0 0.0
    %563 = vmatpush1.msra.mxu0 0.0
    %564 = vmatprep.mubr.f32.mxu0 0.0
    %565 = vmatmul.mubr.f32.gmra.mrb[0].mxu0 %v494
    %v566 = vpop.f32.mrb[0].mxu0
    %v567 = vadd.f32 0.0, %v566
    %v568 = vpop.f32.mrb[0].mxu0
    %569 = vdwg.mxu0
    %v570 = vadd.f32 %v489, %v567
    %v571 = vsub.f32 0.0, %v570
    %v572 = vmul.f32 %v571, 1.442695
    %v573 = vpow.pop %v572
    %v574 = vadd.f32 %v573, 1.0
    %v575 = vrcp.pop %v574
    %v576 = vtanh.pop %v570
    %v577 = vmul.f32 %v575, %v485
    %579 = vrot.lane.b32.xlu0 %v576, 72
    %v580 = vpop.permute.xlu0 %579
    %v582 = vmul.f32 %v575, %v580
    %584 = vrot.lane.b32.xlu0 %v582, 28
    %v585 = vpop.permute.xlu0 %584
    %v587 = vadd.f32 %v577, %v585
    %v588 = vtanh.pop %v587
    %590 = vrot.lane.b32.xlu0 %v588, 56
    %v591 = vpop.permute.xlu0 %590
    %v593 = vmul.f32 %v575, %v591
    %595 = vrot.lane.b32.xlu0 %v593, 72
    %v596 = vpop.permute.xlu0 %595
    %s598 = scalar_lea.vmem %s7, %s487
    %vm599 = vcmask 457952
    %600 = vst.msk [vmem:[%s598] sm:$0xff] %vm599, %v596
  $region41: #{forward.4} parent=0 // loop_footer
    %s483 = sadd.s32 1, %s479
  $region42: #{forward.4} parent=0 // loop_footer_branch
    %478 = sbr.rel target = $region38
  $region43: #{forward.4} parent=0 // loop_exit
    _
  // Predicated region
  $region44: #{forward.4} parent=0 // pred_check
    _
  $region45: #{forward.4} parent=0 // pred_check_branch
    %602 = sbr.rel (0) target = $region47
  $region46: #{forward.4} parent=0 // pred_region
    _
  $region47: #{forward.4} parent=0 // pred_fallthru
    _
  // Predicated region
  $region48: #{forward.4} parent=0 // pred_check
    _
  $region49: #{forward.4} parent=0 // pred_check_branch
    %604 = sbr.rel (0) target = $region51
  $region50: #{forward.4} parent=0 // pred_region
    _
  $region51: #{forward.4} parent=0 // pred_fallthru
    _

// kernel: forward.5
$region0: #{forward.5}
  #allocation0 [shape = 'u32[]', space=smem, size = 0x4, offset = 0x4, fixed_abs, tag = 'smem constant byte address 0x4 - core index']
  #allocation1 [shape = 'u32[144,128]{1,0:T(1,128)}', space=vmem, size = 0x12000, scoped, tag = 'internal scratch']
  #allocation2 [shape = 'f32[8,8,128]{2,1,0:T(8,128)}', space=vmem, size = 0x8000, scoped, tag = 'scratch operand']
  #allocation3 [shape = 'f32[8,8,128]{2,1,0:T(8,128)}', space=vmem, size = 0x8000, scoped, tag = 'scratch operand']
  %s0 = inlined_call_operand.vmem [shape: f32[8,8,64], index: 0, kind: input, shape index: {}]
  %s1 = inlined_call_operand.vmem [shape: f32[64,128], index: 1, kind: input, shape index: {}]
  %s2 = inlined_call_operand.vmem [shape: f32[32,128], index: 2, kind: input, shape index: {}]
  %s3 = inlined_call_operand.vmem [shape: f32[1,128], index: 3, kind: input, shape index: {}]
  %s4 = inlined_call_operand.vmem [shape: f32[64,128], index: 4, kind: input, shape index: {}]
  %s5 = inlined_call_operand.vmem [shape: f32[32,128], index: 5, kind: input, shape index: {}]
  %s6 = inlined_call_operand.vmem [shape: f32[1,128], index: 6, kind: input, shape index: {}]
  %s7 = inlined_call_operand.vmem [shape: f32[8,8,64], index: 7, kind: output, shape index: {}]
  %s8 = sld [smem:[#allocation0]]
  $region52: #{forward.5} parent=0
    _
  %s10 = ssub.s32 1, %s8
  %s11 = scalar_select 0, %s10, %s8
  // Predicated region
  $region2: #{forward.5} parent=0 // pred_check
    _
  $region3: #{forward.5} parent=0 // pred_check_branch
    %13 = sbr.rel (0) target = $region5
  $region4: #{forward.5} parent=0 // pred_region
    _
  $region5: #{forward.5} parent=0 // pred_fallthru
    _
  // Predicated region
  $region6: #{forward.5} parent=0 // pred_check
    _
  $region7: #{forward.5} parent=0 // pred_check_branch
    %15 = sbr.rel (0) target = $region9
  $region8: #{forward.5} parent=0 // pred_region
    _
  $region9: #{forward.5} parent=0 // pred_fallthru
    _
  // Predicated region
  $region10: #{forward.5} parent=0 // pred_check
    _
  $region11: #{forward.5} parent=0 // pred_check_branch
    %17 = sbr.rel (0) target = $region13
  $region12: #{forward.5} parent=0 // pred_region
    _
  $region13: #{forward.5} parent=0 // pred_fallthru
    _
  // Predicated region
  $region14: #{forward.5} parent=0 // pred_check
    _
  $region15: #{forward.5} parent=0 // pred_check_branch
    %19 = sbr.rel (0) target = $region17
  $region16: #{forward.5} parent=0 // pred_region
    _
  $region17: #{forward.5} parent=0 // pred_fallthru
    _
  // Predicated region
  $region18: #{forward.5} parent=0 // pred_check
    _
  $region19: #{forward.5} parent=0 // pred_check_branch
    %21 = sbr.rel (0) target = $region21
  $region20: #{forward.5} parent=0 // pred_region
    _
  $region21: #{forward.5} parent=0 // pred_fallthru
    _
  // Predicated region
  $region22: #{forward.5} parent=0 // pred_check
    _
  $region23: #{forward.5} parent=0 // pred_check_branch
    %23 = sbr.rel (0) target = $region25
  $region24: #{forward.5} parent=0 // pred_region
    _
  $region25: #{forward.5} parent=0 // pred_fallthru
    _
  // Predicated region
  $region26: #{forward.5} parent=0 // pred_check
    _
  $region27: #{forward.5} parent=0 // pred_check_branch
    %25 = sbr.rel (0) target = $region29
  $region28: #{forward.5} parent=0 // pred_region
    _
  $region29: #{forward.5} parent=0 // pred_fallthru
    _
  %v26 = vld [vmem:[%s0] sm:$0xff]
  %v27 = vld [vmem:[%s0 + $0x8] sm:$0xff]
  %v28 = vld [vmem:[%s0 + $0x10] sm:$0xff]
  %v29 = vld [vmem:[%s0 + $0x18] sm:$0xff]
  %v30 = vld [vmem:[%s0 + $0x20] sm:$0xff]
  %v31 = vld [vmem:[%s0 + $0x28] sm:$0xff]
  %v32 = vld [vmem:[%s0 + $0x30] sm:$0xff]
  %v33 = vld [vmem:[%s0 + $0x38] sm:$0xff]
  %v34 = vld [vmem:[%s1] sm:$0xff]
  %v35 = vld [vmem:[%s1 + $0x8] sm:$0xff]
  %v36 = vld [vmem:[%s1 + $0x10] sm:$0xff]
  %v37 = vld [vmem:[%s1 + $0x18] sm:$0xff]
  %v38 = vld [vmem:[%s1 + $0x20] sm:$0xff]
  %v39 = vld [vmem:[%s1 + $0x28] sm:$0xff]
  %v40 = vld [vmem:[%s1 + $0x30] sm:$0xff]
  %v41 = vld [vmem:[%s1 + $0x38] sm:$0xff]
  %v42 = vld [vmem:[%s3] sm:$0x1]
  %v44 = vlaneseq
  %v45 = vshrl.u32 %v44, 7
  %v46 = vsub.s32 0, %v45
  %v47 = vrot.slane %v42, %v46
  %vm49 = vcmask 523264
  %v51 = vsel %vm49, %v26, 0
  %v54 = vsel %vm49, %v27, 0
  %v57 = vsel %vm49, %v28, 0
  %v60 = vsel %vm49, %v29, 0
  %v63 = vsel %vm49, %v30, 0
  %v66 = vsel %vm49, %v31, 0
  %v69 = vsel %vm49, %v32, 0
  %v72 = vsel %vm49, %v33, 0
  %74 = vmatprep.subr.mxu0 0.0
  %75 = vmatpush1.msra.mxu0 %v34
  %76 = vmatprep.subr.mxu0 0.0
  %77 = vmatpush1.msra.mxu0 %v35
  %78 = vmatprep.subr.mxu0 0.0
  %79 = vmatpush1.msra.mxu0 %v36
  %80 = vmatprep.subr.mxu0 0.0
  %81 = vmatpush1.msra.mxu0 %v37
  %82 = vmatprep.subr.mxu0 0.0
  %83 = vmatpush1.msra.mxu0 %v38
  %84 = vmatprep.subr.mxu0 0.0
  %85 = vmatpush1.msra.mxu0 %v39
  %86 = vmatprep.subr.mxu0 0.0
  %87 = vmatpush1.msra.mxu0 %v40
  %88 = vmatprep.subr.mxu0 0.0
  %89 = vmatpush1.msra.mxu0 %v41
  %90 = vmatprep.subr.mxu0 0.0
  %91 = vmatpush1.msra.mxu0 0.0
  %92 = vmatprep.subr.mxu0 0.0
  %93 = vmatpush1.msra.mxu0 0.0
  %94 = vmatprep.subr.mxu0 0.0
  %95 = vmatpush1.msra.mxu0 0.0
  %96 = vmatprep.subr.mxu0 0.0
  %97 = vmatpush1.msra.mxu0 0.0
  %98 = vmatprep.subr.mxu0 0.0
  %99 = vmatpush1.msra.mxu0 0.0
  %100 = vmatprep.subr.mxu0 0.0
  %101 = vmatpush1.msra.mxu0 0.0
  %102 = vmatprep.subr.mxu0 0.0
  %103 = vmatpush1.msra.mxu0 0.0
  %104 = vmatprep.subr.mxu0 0.0
  %105 = vmatpush1.msra.mxu0 0.0
  %106 = vmatprep.subr.mxu0 0.0
  %107 = vmatpush1.msra.mxu0 0.0
  %108 = vmatprep.subr.mxu0 0.0
  %109 = vmatpush1.msra.mxu0 0.0
  %110 = vmatprep.subr.mxu0 0.0
  %111 = vmatpush1.msra.mxu0 0.0
  %112 = vmatprep.subr.mxu0 0.0
  %113 = vmatpush1.msra.mxu0 0.0
  %114 = vmatprep.subr.mxu0 0.0
  %115 = vmatpush1.msra.mxu0 0.0
  %116 = vmatprep.subr.mxu0 0.0
  %117 = vmatpush1.msra.mxu0 0.0
  %118 = vmatprep.subr.mxu0 0.0
  %119 = vmatpush1.msra.mxu0 0.0
  %120 = vmatprep.subr.mxu0 0.0
  %121 = vmatpush1.msra.mxu0 0.0
  %122 = vmatprep.subr.mxu0 0.0
  %123 = vmatpush1.msra.mxu0 0.0
  %124 = vmatprep.subr.mxu0 0.0
  %125 = vmatpush1.msra.mxu0 0.0
  %126 = vmatprep.subr.mxu0 0.0
  %127 = vmatpush1.msra.mxu0 0.0
  %128 = vmatprep.subr.mxu0 0.0
  %129 = vmatpush1.msra.mxu0 0.0
  %130 = vmatprep.subr.mxu0 0.0
  %131 = vmatpush1.msra.mxu0 0.0
  %132 = vmatprep.subr.mxu0 0.0
  %133 = vmatpush1.msra.mxu0 0.0
  %134 = vmatprep.subr.mxu0 0.0
  %135 = vmatpush1.msra.mxu0 0.0
  %136 = vmatprep.subr.mxu0 0.0
  %137 = vmatpush1.msra.mxu0 0.0
  %138 = vmatprep.mubr.f32.mxu0 0.0
  %139 = vmatmul.mubr.f32.gmra.mrb[0].mxu0 %v51
  %v140 = vpop.f32.mrb[0].mxu0
  %v141 = vadd.f32 %v47, %v140
  %v142 = vpop.f32.mrb[0].mxu0
  %143 = vmatprep.mubr.f32.mxu0 0.0
  %144 = vmatmul.mubr.f32.gmra.mrb[0].mxu0 %v54
  %v145 = vpop.f32.mrb[0].mxu0
  %v146 = vadd.f32 %v47, %v145
  %v147 = vpop.f32.mrb[0].mxu0
  %148 = vmatprep.mubr.f32.mxu0 0.0
  %149 = vmatmul.mubr.f32.gmra.mrb[0].mxu0 %v57
  %v150 = vpop.f32.mrb[0].mxu0
  %v151 = vadd.f32 %v47, %v150
  %v152 = vpop.f32.mrb[0].mxu0
  %153 = vmatprep.mubr.f32.mxu0 0.0
  %154 = vmatmul.mubr.f32.gmra.mrb[0].mxu0 %v60
  %v155 = vpop.f32.mrb[0].mxu0
  %v156 = vadd.f32 %v47, %v155
  %v157 = vpop.f32.mrb[0].mxu0
  %158 = vmatprep.mubr.f32.mxu0 0.0
  %159 = vmatmul.mubr.f32.gmra.mrb[0].mxu0 %v63
  %v160 = vpop.f32.mrb[0].mxu0
  %v161 = vadd.f32 %v47, %v160
  %v162 = vpop.f32.mrb[0].mxu0
  %163 = vmatprep.mubr.f32.mxu0 0.0
  %164 = vmatmul.mubr.f32.gmra.mrb[0].mxu0 %v66
  %v165 = vpop.f32.mrb[0].mxu0
  %v166 = vadd.f32 %v47, %v165
  %v167 = vpop.f32.mrb[0].mxu0
  %168 = vmatprep.mubr.f32.mxu0 0.0
  %169 = vmatmul.mubr.f32.gmra.mrb[0].mxu0 %v69
  %v170 = vpop.f32.mrb[0].mxu0
  %v171 = vadd.f32 %v47, %v170
  %v172 = vpop.f32.mrb[0].mxu0
  %173 = vmatprep.mubr.f32.mxu0 0.0
  %174 = vmatmul.mubr.f32.gmra.mrb[0].mxu0 %v72
  %v175 = vpop.f32.mrb[0].mxu0
  %v176 = vadd.f32 %v47, %v175
  %v177 = vpop.f32.mrb[0].mxu0
  %178 = vdwg.mxu0
  %179 = vst [vmem:[#allocation2] sm:$0xff] %v141
  %180 = vst [vmem:[#allocation2 + $0x8] sm:$0xff] %v146
  %181 = vst [vmem:[#allocation2 + $0x10] sm:$0xff] %v151
  %182 = vst [vmem:[#allocation2 + $0x18] sm:$0xff] %v156
  %183 = vst [vmem:[#allocation2 + $0x20] sm:$0xff] %v161
  %184 = vst [vmem:[#allocation2 + $0x28] sm:$0xff] %v166
  %185 = vst [vmem:[#allocation2 + $0x30] sm:$0xff] %v171
  %186 = vst [vmem:[#allocation2 + $0x38] sm:$0xff] %v176
  %v187 = vld [vmem:[%s0] sm:$0xff]
  %v188 = vld [vmem:[%s0 + $0x8] sm:$0xff]
  %v189 = vld [vmem:[%s0 + $0x10] sm:$0xff]
  %v190 = vld [vmem:[%s0 + $0x18] sm:$0xff]
  %v191 = vld [vmem:[%s0 + $0x20] sm:$0xff]
  %v192 = vld [vmem:[%s0 + $0x28] sm:$0xff]
  %v193 = vld [vmem:[%s0 + $0x30] sm:$0xff]
  %v194 = vld [vmem:[%s0 + $0x38] sm:$0xff]
  %v195 = vld [vmem:[%s4] sm:$0xff]
  %v196 = vld [vmem:[%s4 + $0x8] sm:$0xff]
  %v197 = vld [vmem:[%s4 + $0x10] sm:$0xff]
  %v198 = vld [vmem:[%s4 + $0x18] sm:$0xff]
  %v199 = vld [vmem:[%s4 + $0x20] sm:$0xff]
  %v200 = vld [vmem:[%s4 + $0x28] sm:$0xff]
  %v201 = vld [vmem:[%s4 + $0x30] sm:$0xff]
  %v202 = vld [vmem:[%s4 + $0x38] sm:$0xff]
  %v203 = vld [vmem:[%s6] sm:$0x1]
  %v205 = vlaneseq
  %v206 = vshrl.u32 %v205, 7
  %v207 = vsub.s32 0, %v206
  %v208 = vrot.slane %v203, %v207
  %v211 = vsel %vm49, %v187, 0
  %v214 = vsel %vm49, %v188, 0
  %v217 = vsel %vm49, %v189, 0
  %v220 = vsel %vm49, %v190, 0
  %v223 = vsel %vm49, %v191, 0
  %v226 = vsel %vm49, %v192, 0
  %v229 = vsel %vm49, %v193, 0
  %v232 = vsel %vm49, %v194, 0
  %234 = vmatprep.subr.mxu0 0.0
  %235 = vmatpush1.msra.mxu0 %v195
  %236 = vmatprep.subr.mxu0 0.0
  %237 = vmatpush1.msra.mxu0 %v196
  %238 = vmatprep.subr.mxu0 0.0
  %239 = vmatpush1.msra.mxu0 %v197
  %240 = vmatprep.subr.mxu0 0.0
  %241 = vmatpush1.msra.mxu0 %v198
  %242 = vmatprep.subr.mxu0 0.0
  %243 = vmatpush1.msra.mxu0 %v199
  %244 = vmatprep.subr.mxu0 0.0
  %245 = vmatpush1.msra.mxu0 %v200
  %246 = vmatprep.subr.mxu0 0.0
  %247 = vmatpush1.msra.mxu0 %v201
  %248 = vmatprep.subr.mxu0 0.0
  %249 = vmatpush1.msra.mxu0 %v202
  %250 = vmatprep.subr.mxu0 0.0
  %251 = vmatpush1.msra.mxu0 0.0
  %252 = vmatprep.subr.mxu0 0.0
  %253 = vmatpush1.msra.mxu0 0.0
  %254 = vmatprep.subr.mxu0 0.0
  %255 = vmatpush1.msra.mxu0 0.0
  %256 = vmatprep.subr.mxu0 0.0
  %257 = vmatpush1.msra.mxu0 0.0
  %258 = vmatprep.subr.mxu0 0.0
  %259 = vmatpush1.msra.mxu0 0.0
  %260 = vmatprep.subr.mxu0 0.0
  %261 = vmatpush1.msra.mxu0 0.0
  %262 = vmatprep.subr.mxu0 0.0
  %263 = vmatpush1.msra.mxu0 0.0
  %264 = vmatprep.subr.mxu0 0.0
  %265 = vmatpush1.msra.mxu0 0.0
  %266 = vmatprep.subr.mxu0 0.0
  %267 = vmatpush1.msra.mxu0 0.0
  %268 = vmatprep.subr.mxu0 0.0
  %269 = vmatpush1.msra.mxu0 0.0
  %270 = vmatprep.subr.mxu0 0.0
  %271 = vmatpush1.msra.mxu0 0.0
  %272 = vmatprep.subr.mxu0 0.0
  %273 = vmatpush1.msra.mxu0 0.0
  %274 = vmatprep.subr.mxu0 0.0
  %275 = vmatpush1.msra.mxu0 0.0
  %276 = vmatprep.subr.mxu0 0.0
  %277 = vmatpush1.msra.mxu0 0.0
  %278 = vmatprep.subr.mxu0 0.0
  %279 = vmatpush1.msra.mxu0 0.0
  %280 = vmatprep.subr.mxu0 0.0
  %281 = vmatpush1.msra.mxu0 0.0
  %282 = vmatprep.subr.mxu0 0.0
  %283 = vmatpush1.msra.mxu0 0.0
  %284 = vmatprep.subr.mxu0 0.0
  %285 = vmatpush1.msra.mxu0 0.0
  %286 = vmatprep.subr.mxu0 0.0
  %287 = vmatpush1.msra.mxu0 0.0
  %288 = vmatprep.subr.mxu0 0.0
  %289 = vmatpush1.msra.mxu0 0.0
  %290 = vmatprep.subr.mxu0 0.0
  %291 = vmatpush1.msra.mxu0 0.0
  %292 = vmatprep.subr.mxu0 0.0
  %293 = vmatpush1.msra.mxu0 0.0
  %294 = vmatprep.subr.mxu0 0.0
  %295 = vmatpush1.msra.mxu0 0.0
  %296 = vmatprep.subr.mxu0 0.0
  %297 = vmatpush1.msra.mxu0 0.0
  %298 = vmatprep.mubr.f32.mxu0 0.0
  %299 = vmatmul.mubr.f32.gmra.mrb[0].mxu0 %v211
  %v300 = vpop.f32.mrb[0].mxu0
  %v301 = vadd.f32 %v208, %v300
  %v302 = vpop.f32.mrb[0].mxu0
  %303 = vmatprep.mubr.f32.mxu0 0.0
  %304 = vmatmul.mubr.f32.gmra.mrb[0].mxu0 %v214
  %v305 = vpop.f32.mrb[0].mxu0
  %v306 = vadd.f32 %v208, %v305
  %v307 = vpop.f32.mrb[0].mxu0
  %308 = vmatprep.mubr.f32.mxu0 0.0
  %309 = vmatmul.mubr.f32.gmra.mrb[0].mxu0 %v217
  %v310 = vpop.f32.mrb[0].mxu0
  %v311 = vadd.f32 %v208, %v310
  %v312 = vpop.f32.mrb[0].mxu0
  %313 = vmatprep.mubr.f32.mxu0 0.0
  %314 = vmatmul.mubr.f32.gmra.mrb[0].mxu0 %v220
  %v315 = vpop.f32.mrb[0].mxu0
  %v316 = vadd.f32 %v208, %v315
  %v317 = vpop.f32.mrb[0].mxu0
  %318 = vmatprep.mubr.f32.mxu0 0.0
  %319 = vmatmul.mubr.f32.gmra.mrb[0].mxu0 %v223
  %v320 = vpop.f32.mrb[0].mxu0
  %v321 = vadd.f32 %v208, %v320
  %v322 = vpop.f32.mrb[0].mxu0
  %323 = vmatprep.mubr.f32.mxu0 0.0
  %324 = vmatmul.mubr.f32.gmra.mrb[0].mxu0 %v226
  %v325 = vpop.f32.mrb[0].mxu0
  %v326 = vadd.f32 %v208, %v325
  %v327 = vpop.f32.mrb[0].mxu0
  %328 = vmatprep.mubr.f32.mxu0 0.0
  %329 = vmatmul.mubr.f32.gmra.mrb[0].mxu0 %v229
  %v330 = vpop.f32.mrb[0].mxu0
  %v331 = vadd.f32 %v208, %v330
  %v332 = vpop.f32.mrb[0].mxu0
  %333 = vmatprep.mubr.f32.mxu0 0.0
  %334 = vmatmul.mubr.f32.gmra.mrb[0].mxu0 %v232
  %v335 = vpop.f32.mrb[0].mxu0
  %v336 = vadd.f32 %v208, %v335
  %v337 = vpop.f32.mrb[0].mxu0
  %338 = vdwg.mxu0
  %339 = vst [vmem:[#allocation3] sm:$0xff] %v301
  %340 = vst [vmem:[#allocation3 + $0x8] sm:$0xff] %v306
  %341 = vst [vmem:[#allocation3 + $0x10] sm:$0xff] %v311
  %342 = vst [vmem:[#allocation3 + $0x18] sm:$0xff] %v316
  %343 = vst [vmem:[#allocation3 + $0x20] sm:$0xff] %v321
  %344 = vst [vmem:[#allocation3 + $0x28] sm:$0xff] %v326
  %345 = vst [vmem:[#allocation3 + $0x30] sm:$0xff] %v331
  %346 = vst [vmem:[#allocation3 + $0x38] sm:$0xff] %v336
  %v347 = vld [vmem:[%s2] sm:$0xff]
  %v348 = vld [vmem:[%s2 + $0x8] sm:$0xff]
  %v349 = vld [vmem:[%s2 + $0x10] sm:$0xff]
  %v350 = vld [vmem:[%s2 + $0x18] sm:$0xff]
  loop: start=0, step=1, limit=8
  $region30: #{forward.5} parent=0 // loop_pre_header
    _
  $region31: #{forward.5} parent=0 // loop_header
    %s352 = sphi 0, %s356
    %p353 = scmp.ge.s32.totalorder %s352, 8
    %v357 = vphi 0.0, %v461
    %v358 = vphi 0.0, %v455
  $region32: #{forward.5} parent=0 // loop_header_branch
    %355 = sbr.rel (%p353) target = $region36
  $region33: #{forward.5} parent=0 // loop_body
    %s359 = smul.u32 %s352, 8
    %s360 = scalar_lea.vmem [#allocation2], %s359
    %v361 = vld [vmem:[%s360] sm:$0xff]
    %363 = vrot.lane.b32.xlu0 %v357, 32
    %v364 = vpop.permute.xlu0 %363
    %vm365 = vcmask 261120
    %v366 = vsel %vm365, %v364, 0
    %368 = vmatprep.subr.mxu0 0.0
    %369 = vmatpush1.msra.mxu0 %v347
    %370 = vmatprep.subr.mxu0 0.0
    %371 = vmatpush1.msra.mxu0 %v348
    %372 = vmatprep.subr.mxu0 0.0
    %373 = vmatpush1.msra.mxu0 %v349
    %374 = vmatprep.subr.mxu0 0.0
    %375 = vmatpush1.msra.mxu0 %v350
    %376 = vmatprep.subr.mxu0 0.0
    %377 = vmatpush1.msra.mxu0 0.0
    %378 = vmatprep.subr.mxu0 0.0
    %379 = vmatpush1.msra.mxu0 0.0
    %380 = vmatprep.subr.mxu0 0.0
    %381 = vmatpush1.msra.mxu0 0.0
    %382 = vmatprep.subr.mxu0 0.0
    %383 = vmatpush1.msra.mxu0 0.0
    %384 = vmatprep.subr.mxu0 0.0
    %385 = vmatpush1.msra.mxu0 0.0
    %386 = vmatprep.subr.mxu0 0.0
    %387 = vmatpush1.msra.mxu0 0.0
    %388 = vmatprep.subr.mxu0 0.0
    %389 = vmatpush1.msra.mxu0 0.0
    %390 = vmatprep.subr.mxu0 0.0
    %391 = vmatpush1.msra.mxu0 0.0
    %392 = vmatprep.subr.mxu0 0.0
    %393 = vmatpush1.msra.mxu0 0.0
    %394 = vmatprep.subr.mxu0 0.0
    %395 = vmatpush1.msra.mxu0 0.0
    %396 = vmatprep.subr.mxu0 0.0
    %397 = vmatpush1.msra.mxu0 0.0
    %398 = vmatprep.subr.mxu0 0.0
    %399 = vmatpush1.msra.mxu0 0.0
    %400 = vmatprep.subr.mxu0 0.0
    %401 = vmatpush1.msra.mxu0 0.0
    %402 = vmatprep.subr.mxu0 0.0
    %403 = vmatpush1.msra.mxu0 0.0
    %404 = vmatprep.subr.mxu0 0.0
    %405 = vmatpush1.msra.mxu0 0.0
    %406 = vmatprep.subr.mxu0 0.0
    %407 = vmatpush1.msra.mxu0 0.0
    %408 = vmatprep.subr.mxu0 0.0
    %409 = vmatpush1.msra.mxu0 0.0
    %410 = vmatprep.subr.mxu0 0.0
    %411 = vmatpush1.msra.mxu0 0.0
    %412 = vmatprep.subr.mxu0 0.0
    %413 = vmatpush1.msra.mxu0 0.0
    %414 = vmatprep.subr.mxu0 0.0
    %415 = vmatpush1.msra.mxu0 0.0
    %416 = vmatprep.subr.mxu0 0.0
    %417 = vmatpush1.msra.mxu0 0.0
    %418 = vmatprep.subr.mxu0 0.0
    %419 = vmatpush1.msra.mxu0 0.0
    %420 = vmatprep.subr.mxu0 0.0
    %421 = vmatpush1.msra.mxu0 0.0
    %422 = vmatprep.subr.mxu0 0.0
    %423 = vmatpush1.msra.mxu0 0.0
    %424 = vmatprep.subr.mxu0 0.0
    %425 = vmatpush1.msra.mxu0 0.0
    %426 = vmatprep.subr.mxu0 0.0
    %427 = vmatpush1.msra.mxu0 0.0
    %428 = vmatprep.subr.mxu0 0.0
    %429 = vmatpush1.msra.mxu0 0.0
    %430 = vmatprep.subr.mxu0 0.0
    %431 = vmatpush1.msra.mxu0 0.0
    %432 = vmatprep.mubr.f32.mxu0 0.0
    %433 = vmatmul.mubr.f32.gmra.mrb[0].mxu0 %v366
    %v434 = vpop.f32.mrb[0].mxu0
    %v435 = vadd.f32 0.0, %v434
    %v436 = vpop.f32.mrb[0].mxu0
    %437 = vdwg.mxu0
    %v438 = vadd.f32 %v361, %v435
    %v439 = vsub.f32 0.0, %v438
    %v440 = vmul.f32 %v439, 1.442695
    %v441 = vpow.pop %v440
    %v442 = vadd.f32 %v441, 1.0
    %v443 = vrcp.pop %v442
    %v444 = vtanh.pop %v438
    %v445 = vmul.f32 %v443, %v358
    %447 = vrot.lane.b32.xlu0 %v444, 64
    %v448 = vpop.permute.xlu0 %447
    %v450 = vmul.f32 %v443, %v448
    %452 = vrot.lane.b32.xlu0 %v450, 32
    %v453 = vpop.permute.xlu0 %452
    %v455 = vadd.f32 %v445, %v453
    %v456 = vtanh.pop %v455
    %458 = vrot.lane.b32.xlu0 %v456, 64
    %v459 = vpop.permute.xlu0 %458
    %v461 = vmul.f32 %v443, %v459
    %463 = vrot.lane.b32.xlu0 %v461, 32
    %v464 = vpop.permute.xlu0 %463
    %s466 = scalar_lea.vmem %s7, %s359
    %467 = vst.msk [vmem:[%s466] sm:$0xff] %vm365, %v464
  $region34: #{forward.5} parent=0 // loop_footer
    %s356 = sadd.s32 1, %s352
  $region35: #{forward.5} parent=0 // loop_footer_branch
    %351 = sbr.rel target = $region31
  $region36: #{forward.5} parent=0 // loop_exit
    _
  %v468 = vld [vmem:[%s5] sm:$0xff]
  %v469 = vld [vmem:[%s5 + $0x8] sm:$0xff]
  %v470 = vld [vmem:[%s5 + $0x10] sm:$0xff]
  %v471 = vld [vmem:[%s5 + $0x18] sm:$0xff]
  loop: start=0, step=1, limit=8
  $region37: #{forward.5} parent=0 // loop_pre_header
    _
  $region38: #{forward.5} parent=0 // loop_header
    %s473 = sphi 0, %s477
    %p474 = scmp.ge.s32.totalorder %s473, 8
    %v478 = vphi 0.0, %v583
    %v479 = vphi 0.0, %v577
  $region39: #{forward.5} parent=0 // loop_header_branch
    %476 = sbr.rel (%p474) target = $region43
  $region40: #{forward.5} parent=0 // loop_body
    %s480 = ssub.s32 7, %s473
    %s481 = smul.u32 %s480, 8
    %s482 = scalar_lea.vmem [#allocation3], %s481
    %v483 = vld [vmem:[%s482] sm:$0xff]
    %485 = vrot.lane.b32.xlu0 %v478, 32
    %v486 = vpop.permute.xlu0 %485
    %vm487 = vcmask 261120
    %v488 = vsel %vm487, %v486, 0
    %490 = vmatprep.subr.mxu0 0.0
    %491 = vmatpush1.msra.mxu0 %v468
    %492 = vmatprep.subr.mxu0 0.0
    %493 = vmatpush1.msra.mxu0 %v469
    %494 = vmatprep.subr.mxu0 0.0
    %495 = vmatpush1.msra.mxu0 %v470
    %496 = vmatprep.subr.mxu0 0.0
    %497 = vmatpush1.msra.mxu0 %v471
    %498 = vmatprep.subr.mxu0 0.0
    %499 = vmatpush1.msra.mxu0 0.0
    %500 = vmatprep.subr.mxu0 0.0
    %501 = vmatpush1.msra.mxu0 0.0
    %502 = vmatprep.subr.mxu0 0.0
    %503 = vmatpush1.msra.mxu0 0.0
    %504 = vmatprep.subr.mxu0 0.0
    %505 = vmatpush1.msra.mxu0 0.0
    %506 = vmatprep.subr.mxu0 0.0
    %507 = vmatpush1.msra.mxu0 0.0
    %508 = vmatprep.subr.mxu0 0.0
    %509 = vmatpush1.msra.mxu0 0.0
    %510 = vmatprep.subr.mxu0 0.0
    %511 = vmatpush1.msra.mxu0 0.0
    %512 = vmatprep.subr.mxu0 0.0
    %513 = vmatpush1.msra.mxu0 0.0
    %514 = vmatprep.subr.mxu0 0.0
    %515 = vmatpush1.msra.mxu0 0.0
    %516 = vmatprep.subr.mxu0 0.0
    %517 = vmatpush1.msra.mxu0 0.0
    %518 = vmatprep.subr.mxu0 0.0
    %519 = vmatpush1.msra.mxu0 0.0
    %520 = vmatprep.subr.mxu0 0.0
    %521 = vmatpush1.msra.mxu0 0.0
    %522 = vmatprep.subr.mxu0 0.0
    %523 = vmatpush1.msra.mxu0 0.0
    %524 = vmatprep.subr.mxu0 0.0
    %525 = vmatpush1.msra.mxu0 0.0
    %526 = vmatprep.subr.mxu0 0.0
    %527 = vmatpush1.msra.mxu0 0.0
    %528 = vmatprep.subr.mxu0 0.0
    %529 = vmatpush1.msra.mxu0 0.0
    %530 = vmatprep.subr.mxu0 0.0
    %531 = vmatpush1.msra.mxu0 0.0
    %532 = vmatprep.subr.mxu0 0.0
    %533 = vmatpush1.msra.mxu0 0.0
    %534 = vmatprep.subr.mxu0 0.0
    %535 = vmatpush1.msra.mxu0 0.0
    %536 = vmatprep.subr.mxu0 0.0
    %537 = vmatpush1.msra.mxu0 0.0
    %538 = vmatprep.subr.mxu0 0.0
    %539 = vmatpush1.msra.mxu0 0.0
    %540 = vmatprep.subr.mxu0 0.0
    %541 = vmatpush1.msra.mxu0 0.0
    %542 = vmatprep.subr.mxu0 0.0
    %543 = vmatpush1.msra.mxu0 0.0
    %544 = vmatprep.subr.mxu0 0.0
    %545 = vmatpush1.msra.mxu0 0.0
    %546 = vmatprep.subr.mxu0 0.0
    %547 = vmatpush1.msra.mxu0 0.0
    %548 = vmatprep.subr.mxu0 0.0
    %549 = vmatpush1.msra.mxu0 0.0
    %550 = vmatprep.subr.mxu0 0.0
    %551 = vmatpush1.msra.mxu0 0.0
    %552 = vmatprep.subr.mxu0 0.0
    %553 = vmatpush1.msra.mxu0 0.0
    %554 = vmatprep.mubr.f32.mxu0 0.0
    %555 = vmatmul.mubr.f32.gmra.mrb[0].mxu0 %v488
    %v556 = vpop.f32.mrb[0].mxu0
    %v557 = vadd.f32 0.0, %v556
    %v558 = vpop.f32.mrb[0].mxu0
    %559 = vdwg.mxu0
    %v560 = vadd.f32 %v483, %v557
    %v561 = vsub.f32 0.0, %v560
    %v562 = vmul.f32 %v561, 1.442695
    %v563 = vpow.pop %v562
    %v564 = vadd.f32 %v563, 1.0
    %v565 = vrcp.pop %v564
    %v566 = vtanh.pop %v560
    %v567 = vmul.f32 %v565, %v479
    %569 = vrot.lane.b32.xlu0 %v566, 64
    %v570 = vpop.permute.xlu0 %569
    %v572 = vmul.f32 %v565, %v570
    %574 = vrot.lane.b32.xlu0 %v572, 32
    %v575 = vpop.permute.xlu0 %574
    %v577 = vadd.f32 %v567, %v575
    %v578 = vtanh.pop %v577
    %580 = vrot.lane.b32.xlu0 %v578, 64
    %v581 = vpop.permute.xlu0 %580
    %v583 = vmul.f32 %v565, %v581
    %585 = vrot.lane.b32.xlu0 %v583, 64
    %v586 = vpop.permute.xlu0 %585
    %s588 = scalar_lea.vmem %s7, %s481
    %vm589 = vcmask 523520
    %590 = vst.msk [vmem:[%s588] sm:$0xff] %vm589, %v586
  $region41: #{forward.5} parent=0 // loop_footer
    %s477 = sadd.s32 1, %s473
  $region42: #{forward.5} parent=0 // loop_footer_branch
    %472 = sbr.rel target = $region38
  $region43: #{forward.5} parent=0 // loop_exit
    _
  // Predicated region
  $region44: #{forward.5} parent=0 // pred_check
    _
  $region45: #{forward.5} parent=0 // pred_check_branch
    %592 = sbr.rel (0) target = $region47
  $region46: #{forward.5} parent=0 // pred_region
    _
  $region47: #{forward.5} parent=0 // pred_fallthru
    _
  // Predicated region
  $region48: #{forward.5} parent=0 // pred_check
    _
  $region49: #{forward.5} parent=0 // pred_check_branch
    %594 = sbr.rel (0) target = $region51
  $region50: #{forward.5} parent=0 // pred_region
    _
  $region51: #{forward.5} parent=0 // pred_fallthru
    _

// kernel: forward.7
$region0: #{forward.7}
  #allocation0 [shape = 'u32[]', space=smem, size = 0x4, offset = 0x4, fixed_abs, tag = 'smem constant byte address 0x4 - core index']
  #allocation1 [shape = 'u32[144,128]{1,0:T(1,128)}', space=vmem, size = 0x12000, scoped, tag = 'internal scratch']
  #allocation2 [shape = 'f32[8,8,512]{2,1,0:T(8,128)}', space=vmem, size = 0x20000, scoped, tag = 'scratch operand']
  %s0 = inlined_call_operand.vmem [shape: f32[8,8,72], index: 0, kind: input, shape index: {}]
  %s1 = inlined_call_operand.vmem [shape: f32[72,512], index: 1, kind: input, shape index: {}]
  %s2 = inlined_call_operand.vmem [shape: f32[128,512], index: 2, kind: input, shape index: {}]
  %s3 = inlined_call_operand.vmem [shape: f32[1,512], index: 3, kind: input, shape index: {}]
  %s4 = inlined_call_operand.vmem [shape: f32[8,8,128], index: 4, kind: output, shape index: {}]
  %s5 = sld [smem:[#allocation0]]
  $region33: #{forward.7} parent=0
    _
  %s7 = ssub.s32 1, %s5
  %s8 = scalar_select 0, %s7, %s5
  // Predicated region
  $region2: #{forward.7} parent=0 // pred_check
    _
  $region3: #{forward.7} parent=0 // pred_check_branch
    %10 = sbr.rel (0) target = $region5
  $region4: #{forward.7} parent=0 // pred_region
    _
  $region5: #{forward.7} parent=0 // pred_fallthru
    _
  // Predicated region
  $region6: #{forward.7} parent=0 // pred_check
    _
  $region7: #{forward.7} parent=0 // pred_check_branch
    %12 = sbr.rel (0) target = $region9
  $region8: #{forward.7} parent=0 // pred_region
    _
  $region9: #{forward.7} parent=0 // pred_fallthru
    _
  // Predicated region
  $region10: #{forward.7} parent=0 // pred_check
    _
  $region11: #{forward.7} parent=0 // pred_check_branch
    %14 = sbr.rel (0) target = $region13
  $region12: #{forward.7} parent=0 // pred_region
    _
  $region13: #{forward.7} parent=0 // pred_fallthru
    _
  // Predicated region
  $region14: #{forward.7} parent=0 // pred_check
    _
  $region15: #{forward.7} parent=0 // pred_check_branch
    %16 = sbr.rel (0) target = $region17
  $region16: #{forward.7} parent=0 // pred_region
    _
  $region17: #{forward.7} parent=0 // pred_fallthru
    _
  %v17 = vld [vmem:[%s0] sm:$0xff]
  %v18 = vld [vmem:[%s0 + $0x8] sm:$0xff]
  %v19 = vld [vmem:[%s0 + $0x10] sm:$0xff]
  %v20 = vld [vmem:[%s0 + $0x18] sm:$0xff]
  %v21 = vld [vmem:[%s0 + $0x20] sm:$0xff]
  %v22 = vld [vmem:[%s0 + $0x28] sm:$0xff]
  %v23 = vld [vmem:[%s0 + $0x30] sm:$0xff]
  %v24 = vld [vmem:[%s0 + $0x38] sm:$0xff]
  %v25 = vld [vmem:[%s1] sm:$0xff]
  %v26 = vld [vmem:[%s1 + $0x8] sm:$0xff]
  %v27 = vld [vmem:[%s1 + $0x10] sm:$0xff]
  %v28 = vld [vmem:[%s1 + $0x18] sm:$0xff]
  %v29 = vld [vmem:[%s1 + $0x20] sm:$0xff]
  %v30 = vld [vmem:[%s1 + $0x28] sm:$0xff]
  %v31 = vld [vmem:[%s1 + $0x30] sm:$0xff]
  %v32 = vld [vmem:[%s1 + $0x38] sm:$0xff]
  %v33 = vld [vmem:[%s1 + $0x40] sm:$0xff]
  %v34 = vld [vmem:[%s1 + $0x48] sm:$0xff]
  %v35 = vld [vmem:[%s1 + $0x50] sm:$0xff]
  %v36 = vld [vmem:[%s1 + $0x58] sm:$0xff]
  %v37 = vld [vmem:[%s1 + $0x60] sm:$0xff]
  %v38 = vld [vmem:[%s1 + $0x68] sm:$0xff]
  %v39 = vld [vmem:[%s1 + $0x70] sm:$0xff]
  %v40 = vld [vmem:[%s1 + $0x78] sm:$0xff]
  %v41 = vld [vmem:[%s1 + $0x80] sm:$0xff]
  %v42 = vld [vmem:[%s1 + $0x88] sm:$0xff]
  %v43 = vld [vmem:[%s1 + $0x90] sm:$0xff]
  %v44 = vld [vmem:[%s1 + $0x98] sm:$0xff]
  %v45 = vld [vmem:[%s1 + $0xa0] sm:$0xff]
  %v46 = vld [vmem:[%s1 + $0xa8] sm:$0xff]
  %v47 = vld [vmem:[%s1 + $0xb0] sm:$0xff]
  %v48 = vld [vmem:[%s1 + $0xb8] sm:$0xff]
  %v49 = vld [vmem:[%s1 + $0xc0] sm:$0xff]
  %v50 = vld [vmem:[%s1 + $0xc8] sm:$0xff]
  %v51 = vld [vmem:[%s1 + $0xd0] sm:$0xff]
  %v52 = vld [vmem:[%s1 + $0xd8] sm:$0xff]
  %v53 = vld [vmem:[%s1 + $0xe0] sm:$0xff]
  %v54 = vld [vmem:[%s1 + $0xe8] sm:$0xff]
  %v55 = vld [vmem:[%s1 + $0xf0] sm:$0xff]
  %v56 = vld [vmem:[%s1 + $0xf8] sm:$0xff]
  %v57 = vld [vmem:[%s1 + $0x100] sm:$0xff]
  %v58 = vld [vmem:[%s1 + $0x108] sm:$0xff]
  %v59 = vld [vmem:[%s1 + $0x110] sm:$0xff]
  %v60 = vld [vmem:[%s1 + $0x118] sm:$0xff]
  %v61 = vld [vmem:[%s3] sm:$0xf]
  %v63 = vlaneseq
  %v64 = vshrl.u32 %v63, 7
  %v65 = vsub.s32 0, %v64
  %v66 = vrot.slane %v61, %v65
  %v67 = vlaneseq
  %v68 = vshrl.u32 %v67, 7
  %v69 = vsub.s32 1, %v68
  %v70 = vrot.slane %v61, %v69
  %v71 = vlaneseq
  %v72 = vshrl.u32 %v71, 7
  %v73 = vsub.s32 2, %v72
  %v74 = vrot.slane %v61, %v73
  %v75 = vlaneseq
  %v76 = vshrl.u32 %v75, 7
  %v77 = vsub.s32 3, %v76
  %v78 = vrot.slane %v61, %v77
  %vm83 = vcmask 588800
  %v85 = vsel %vm83, %v17, 0
  %v88 = vsel %vm83, %v18, 0
  %v91 = vsel %vm83, %v19, 0
  %v94 = vsel %vm83, %v20, 0
  %v97 = vsel %vm83, %v21, 0
  %v100 = vsel %vm83, %v22, 0
  %v103 = vsel %vm83, %v23, 0
  %v106 = vsel %vm83, %v24, 0
  %108 = vmatprep.subr.mxu0 %v26
  %109 = vmatpush1.msra.mxu0 %v25
  %110 = vmatprep.subr.mxu0 %v30
  %111 = vmatpush1.msra.mxu0 %v29
  %112 = vmatprep.subr.mxu0 %v34
  %113 = vmatpush1.msra.mxu0 %v33
  %114 = vmatprep.subr.mxu0 %v38
  %115 = vmatpush1.msra.mxu0 %v37
  %116 = vmatprep.subr.mxu0 %v42
  %117 = vmatpush1.msra.mxu0 %v41
  %118 = vmatprep.subr.mxu0 %v46
  %119 = vmatpush1.msra.mxu0 %v45
  %120 = vmatprep.subr.mxu0 %v50
  %121 = vmatpush1.msra.mxu0 %v49
  %122 = vmatprep.subr.mxu0 %v54
  %123 = vmatpush1.msra.mxu0 %v53
  %124 = vmatprep.subr.mxu0 %v58
  %125 = vmatpush1.msra.mxu0 %v57
  %126 = vmatprep.subr.mxu0 0.0
  %127 = vmatpush1.msra.mxu0 0.0
  %128 = vmatprep.subr.mxu0 0.0
  %129 = vmatpush1.msra.mxu0 0.0
  %130 = vmatprep.subr.mxu0 0.0
  %131 = vmatpush1.msra.mxu0 0.0
  %132 = vmatprep.subr.mxu0 0.0
  %133 = vmatpush1.msra.mxu0 0.0
  %134 = vmatprep.subr.mxu0 0.0
  %135 = vmatpush1.msra.mxu0 0.0
  %136 = vmatprep.subr.mxu0 0.0
  %137 = vmatpush1.msra.mxu0 0.0
  %138 = vmatprep.subr.mxu0 0.0
  %139 = vmatpush1.msra.mxu0 0.0
  %140 = vmatprep.subr.mxu0 0.0
  %141 = vmatpush1.msra.mxu0 0.0
  %142 = vmatprep.subr.mxu0 0.0
  %143 = vmatpush1.msra.mxu0 0.0
  %144 = vmatprep.subr.mxu0 0.0
  %145 = vmatpush1.msra.mxu0 0.0
  %146 = vmatprep.subr.mxu0 0.0
  %147 = vmatpush1.msra.mxu0 0.0
  %148 = vmatprep.subr.mxu0 0.0
  %149 = vmatpush1.msra.mxu0 0.0
  %150 = vmatprep.subr.mxu0 0.0
  %151 = vmatpush1.msra.mxu0 0.0
  %152 = vmatprep.subr.mxu0 0.0
  %153 = vmatpush1.msra.mxu0 0.0
  %154 = vmatprep.subr.mxu0 0.0
  %155 = vmatpush1.msra.mxu0 0.0
  %156 = vmatprep.subr.mxu0 0.0
  %157 = vmatpush1.msra.mxu0 0.0
  %158 = vmatprep.subr.mxu0 0.0
  %159 = vmatpush1.msra.mxu0 0.0
  %160 = vmatprep.subr.mxu0 0.0
  %161 = vmatpush1.msra.mxu0 0.0
  %162 = vmatprep.subr.mxu0 0.0
  %163 = vmatpush1.msra.mxu0 0.0
  %164 = vmatprep.subr.mxu0 0.0
  %165 = vmatpush1.msra.mxu0 0.0
  %166 = vmatprep.subr.mxu0 0.0
  %167 = vmatpush1.msra.mxu0 0.0
  %168 = vmatprep.subr.mxu0 0.0
  %169 = vmatpush1.msra.mxu0 0.0
  %170 = vmatprep.subr.mxu0 0.0
  %171 = vmatpush1.msra.mxu0 0.0
  %172 = vmatprep.mubr.f32.mxu0 0.0
  %173 = vmatmul.mubr.f32.gmra.mrb[0].mxu0 %v85
  %v174 = vpop.f32.mrb[0].mxu0
  %v175 = vadd.f32 %v66, %v174
  %v176 = vpop.f32.mrb[0].mxu0
  %v177 = vadd.f32 %v70, %v176
  %178 = vmatprep.mubr.f32.mxu0 0.0
  %179 = vmatmul.mubr.f32.gmra.mrb[0].mxu0 %v88
  %v180 = vpop.f32.mrb[0].mxu0
  %v181 = vadd.f32 %v66, %v180
  %v182 = vpop.f32.mrb[0].mxu0
  %v183 = vadd.f32 %v70, %v182
  %184 = vmatprep.mubr.f32.mxu0 0.0
  %185 = vmatmul.mubr.f32.gmra.mrb[0].mxu0 %v91
  %v186 = vpop.f32.mrb[0].mxu0
  %v187 = vadd.f32 %v66, %v186
  %v188 = vpop.f32.mrb[0].mxu0
  %v189 = vadd.f32 %v70, %v188
  %190 = vmatprep.mubr.f32.mxu0 0.0
  %191 = vmatmul.mubr.f32.gmra.mrb[0].mxu0 %v94
  %v192 = vpop.f32.mrb[0].mxu0
  %v193 = vadd.f32 %v66, %v192
  %v194 = vpop.f32.mrb[0].mxu0
  %v195 = vadd.f32 %v70, %v194
  %196 = vmatprep.mubr.f32.mxu0 0.0
  %197 = vmatmul.mubr.f32.gmra.mrb[0].mxu0 %v97
  %v198 = vpop.f32.mrb[0].mxu0
  %v199 = vadd.f32 %v66, %v198
  %v200 = vpop.f32.mrb[0].mxu0
  %v201 = vadd.f32 %v70, %v200
  %202 = vmatprep.mubr.f32.mxu0 0.0
  %203 = vmatmul.mubr.f32.gmra.mrb[0].mxu0 %v100
  %v204 = vpop.f32.mrb[0].mxu0
  %v205 = vadd.f32 %v66, %v204
  %v206 = vpop.f32.mrb[0].mxu0
  %v207 = vadd.f32 %v70, %v206
  %208 = vmatprep.mubr.f32.mxu0 0.0
  %209 = vmatmul.mubr.f32.gmra.mrb[0].mxu0 %v103
  %v210 = vpop.f32.mrb[0].mxu0
  %v211 = vadd.f32 %v66, %v210
  %v212 = vpop.f32.mrb[0].mxu0
  %v213 = vadd.f32 %v70, %v212
  %214 = vmatprep.mubr.f32.mxu0 0.0
  %215 = vmatmul.mubr.f32.gmra.mrb[0].mxu0 %v106
  %v216 = vpop.f32.mrb[0].mxu0
  %v217 = vadd.f32 %v66, %v216
  %v218 = vpop.f32.mrb[0].mxu0
  %v219 = vadd.f32 %v70, %v218
  %220 = vdwg.mxu0
  %221 = vmatprep.subr.mxu0 %v28
  %222 = vmatpush1.msra.mxu0 %v27
  %223 = vmatprep.subr.mxu0 %v32
  %224 = vmatpush1.msra.mxu0 %v31
  %225 = vmatprep.subr.mxu0 %v36
  %226 = vmatpush1.msra.mxu0 %v35
  %227 = vmatprep.subr.mxu0 %v40
  %228 = vmatpush1.msra.mxu0 %v39
  %229 = vmatprep.subr.mxu0 %v44
  %230 = vmatpush1.msra.mxu0 %v43
  %231 = vmatprep.subr.mxu0 %v48
  %232 = vmatpush1.msra.mxu0 %v47
  %233 = vmatprep.subr.mxu0 %v52
  %234 = vmatpush1.msra.mxu0 %v51
  %235 = vmatprep.subr.mxu0 %v56
  %236 = vmatpush1.msra.mxu0 %v55
  %237 = vmatprep.subr.mxu0 %v60
  %238 = vmatpush1.msra.mxu0 %v59
  %239 = vmatprep.subr.mxu0 0.0
  %240 = vmatpush1.msra.mxu0 0.0
  %241 = vmatprep.subr.mxu0 0.0
  %242 = vmatpush1.msra.mxu0 0.0
  %243 = vmatprep.subr.mxu0 0.0
  %244 = vmatpush1.msra.mxu0 0.0
  %245 = vmatprep.subr.mxu0 0.0
  %246 = vmatpush1.msra.mxu0 0.0
  %247 = vmatprep.subr.mxu0 0.0
  %248 = vmatpush1.msra.mxu0 0.0
  %249 = vmatprep.subr.mxu0 0.0
  %250 = vmatpush1.msra.mxu0 0.0
  %251 = vmatprep.subr.mxu0 0.0
  %252 = vmatpush1.msra.mxu0 0.0
  %253 = vmatprep.subr.mxu0 0.0
  %254 = vmatpush1.msra.mxu0 0.0
  %255 = vmatprep.subr.mxu0 0.0
  %256 = vmatpush1.msra.mxu0 0.0
  %257 = vmatprep.subr.mxu0 0.0
  %258 = vmatpush1.msra.mxu0 0.0
  %259 = vmatprep.subr.mxu0 0.0
  %260 = vmatpush1.msra.mxu0 0.0
  %261 = vmatprep.subr.mxu0 0.0
  %262 = vmatpush1.msra.mxu0 0.0
  %263 = vmatprep.subr.mxu0 0.0
  %264 = vmatpush1.msra.mxu0 0.0
  %265 = vmatprep.subr.mxu0 0.0
  %266 = vmatpush1.msra.mxu0 0.0
  %267 = vmatprep.subr.mxu0 0.0
  %268 = vmatpush1.msra.mxu0 0.0
  %269 = vmatprep.subr.mxu0 0.0
  %270 = vmatpush1.msra.mxu0 0.0
  %271 = vmatprep.subr.mxu0 0.0
  %272 = vmatpush1.msra.mxu0 0.0
  %273 = vmatprep.subr.mxu0 0.0
  %274 = vmatpush1.msra.mxu0 0.0
  %275 = vmatprep.subr.mxu0 0.0
  %276 = vmatpush1.msra.mxu0 0.0
  %277 = vmatprep.subr.mxu0 0.0
  %278 = vmatpush1.msra.mxu0 0.0
  %279 = vmatprep.subr.mxu0 0.0
  %280 = vmatpush1.msra.mxu0 0.0
  %281 = vmatprep.subr.mxu0 0.0
  %282 = vmatpush1.msra.mxu0 0.0
  %283 = vmatprep.subr.mxu0 0.0
  %284 = vmatpush1.msra.mxu0 0.0
  %285 = vmatprep.mubr.f32.mxu0 0.0
  %286 = vmatmul.mubr.f32.gmra.mrb[0].mxu0 %v85
  %v287 = vpop.f32.mrb[0].mxu0
  %v288 = vadd.f32 %v74, %v287
  %v289 = vpop.f32.mrb[0].mxu0
  %v290 = vadd.f32 %v78, %v289
  %291 = vmatprep.mubr.f32.mxu0 0.0
  %292 = vmatmul.mubr.f32.gmra.mrb[0].mxu0 %v88
  %v293 = vpop.f32.mrb[0].mxu0
  %v294 = vadd.f32 %v74, %v293
  %v295 = vpop.f32.mrb[0].mxu0
  %v296 = vadd.f32 %v78, %v295
  %297 = vmatprep.mubr.f32.mxu0 0.0
  %298 = vmatmul.mubr.f32.gmra.mrb[0].mxu0 %v91
  %v299 = vpop.f32.mrb[0].mxu0
  %v300 = vadd.f32 %v74, %v299
  %v301 = vpop.f32.mrb[0].mxu0
  %v302 = vadd.f32 %v78, %v301
  %303 = vmatprep.mubr.f32.mxu0 0.0
  %304 = vmatmul.mubr.f32.gmra.mrb[0].mxu0 %v94
  %v305 = vpop.f32.mrb[0].mxu0
  %v306 = vadd.f32 %v74, %v305
  %v307 = vpop.f32.mrb[0].mxu0
  %v308 = vadd.f32 %v78, %v307
  %309 = vmatprep.mubr.f32.mxu0 0.0
  %310 = vmatmul.mubr.f32.gmra.mrb[0].mxu0 %v97
  %v311 = vpop.f32.mrb[0].mxu0
  %v312 = vadd.f32 %v74, %v311
  %v313 = vpop.f32.mrb[0].mxu0
  %v314 = vadd.f32 %v78, %v313
  %315 = vmatprep.mubr.f32.mxu0 0.0
  %316 = vmatmul.mubr.f32.gmra.mrb[0].mxu0 %v100
  %v317 = vpop.f32.mrb[0].mxu0
  %v318 = vadd.f32 %v74, %v317
  %v319 = vpop.f32.mrb[0].mxu0
  %v320 = vadd.f32 %v78, %v319
  %321 = vmatprep.mubr.f32.mxu0 0.0
  %322 = vmatmul.mubr.f32.gmra.mrb[0].mxu0 %v103
  %v323 = vpop.f32.mrb[0].mxu0
  %v324 = vadd.f32 %v74, %v323
  %v325 = vpop.f32.mrb[0].mxu0
  %v326 = vadd.f32 %v78, %v325
  %327 = vmatprep.mubr.f32.mxu0 0.0
  %328 = vmatmul.mubr.f32.gmra.mrb[0].mxu0 %v106
  %v329 = vpop.f32.mrb[0].mxu0
  %v330 = vadd.f32 %v74, %v329
  %v331 = vpop.f32.mrb[0].mxu0
  %v332 = vadd.f32 %v78, %v331
  %333 = vdwg.mxu0
  %334 = vst [vmem:[#allocation2] sm:$0xff] %v175
  %335 = vst [vmem:[#allocation2 + $0x8] sm:$0xff] %v177
  %336 = vst [vmem:[#allocation2 + $0x10] sm:$0xff] %v288
  %337 = vst [vmem:[#allocation2 + $0x18] sm:$0xff] %v290
  %338 = vst [vmem:[#allocation2 + $0x20] sm:$0xff] %v181
  %339 = vst [vmem:[#allocation2 + $0x28] sm:$0xff] %v183
  %340 = vst [vmem:[#allocation2 + $0x30] sm:$0xff] %v294
  %341 = vst [vmem:[#allocation2 + $0x38] sm:$0xff] %v296
  %342 = vst [vmem:[#allocation2 + $0x40] sm:$0xff] %v187
  %343 = vst [vmem:[#allocation2 + $0x48] sm:$0xff] %v189
  %344 = vst [vmem:[#allocation2 + $0x50] sm:$0xff] %v300
  %345 = vst [vmem:[#allocation2 + $0x58] sm:$0xff] %v302
  %346 = vst [vmem:[#allocation2 + $0x60] sm:$0xff] %v193
  %347 = vst [vmem:[#allocation2 + $0x68] sm:$0xff] %v195
  %348 = vst [vmem:[#allocation2 + $0x70] sm:$0xff] %v306
  %349 = vst [vmem:[#allocation2 + $0x78] sm:$0xff] %v308
  %350 = vst [vmem:[#allocation2 + $0x80] sm:$0xff] %v199
  %351 = vst [vmem:[#allocation2 + $0x88] sm:$0xff] %v201
  %352 = vst [vmem:[#allocation2 + $0x90] sm:$0xff] %v312
  %353 = vst [vmem:[#allocation2 + $0x98] sm:$0xff] %v314
  %354 = vst [vmem:[#allocation2 + $0xa0] sm:$0xff] %v205
  %355 = vst [vmem:[#allocation2 + $0xa8] sm:$0xff] %v207
  %356 = vst [vmem:[#allocation2 + $0xb0] sm:$0xff] %v318
  %357 = vst [vmem:[#allocation2 + $0xb8] sm:$0xff] %v320
  %358 = vst [vmem:[#allocation2 + $0xc0] sm:$0xff] %v211
  %359 = vst [vmem:[#allocation2 + $0xc8] sm:$0xff] %v213
  %360 = vst [vmem:[#allocation2 + $0xd0] sm:$0xff] %v324
  %361 = vst [vmem:[#allocation2 + $0xd8] sm:$0xff] %v326
  %362 = vst [vmem:[#allocation2 + $0xe0] sm:$0xff] %v217
  %363 = vst [vmem:[#allocation2 + $0xe8] sm:$0xff] %v219
  %364 = vst [vmem:[#allocation2 + $0xf0] sm:$0xff] %v330
  %365 = vst [vmem:[#allocation2 + $0xf8] sm:$0xff] %v332
  %v366 = vld [vmem:[%s2] sm:$0xff]
  %v367 = vld [vmem:[%s2 + $0x8] sm:$0xff]
  %v368 = vld [vmem:[%s2 + $0x10] sm:$0xff]
  %v369 = vld [vmem:[%s2 + $0x18] sm:$0xff]
  %v370 = vld [vmem:[%s2 + $0x20] sm:$0xff]
  %v371 = vld [vmem:[%s2 + $0x28] sm:$0xff]
  %v372 = vld [vmem:[%s2 + $0x30] sm:$0xff]
  %v373 = vld [vmem:[%s2 + $0x38] sm:$0xff]
  %v374 = vld [vmem:[%s2 + $0x40] sm:$0xff]
  %v375 = vld [vmem:[%s2 + $0x48] sm:$0xff]
  %v376 = vld [vmem:[%s2 + $0x50] sm:$0xff]
  %v377 = vld [vmem:[%s2 + $0x58] sm:$0xff]
  %v378 = vld [vmem:[%s2 + $0x60] sm:$0xff]
  %v379 = vld [vmem:[%s2 + $0x68] sm:$0xff]
  %v380 = vld [vmem:[%s2 + $0x70] sm:$0xff]
  %v381 = vld [vmem:[%s2 + $0x78] sm:$0xff]
  %v382 = vld [vmem:[%s2 + $0x80] sm:$0xff]
  %v383 = vld [vmem:[%s2 + $0x88] sm:$0xff]
  %v384 = vld [vmem:[%s2 + $0x90] sm:$0xff]
  %v385 = vld [vmem:[%s2 + $0x98] sm:$0xff]
  %v386 = vld [vmem:[%s2 + $0xa0] sm:$0xff]
  %v387 = vld [vmem:[%s2 + $0xa8] sm:$0xff]
  %v388 = vld [vmem:[%s2 + $0xb0] sm:$0xff]
  %v389 = vld [vmem:[%s2 + $0xb8] sm:$0xff]
  %v390 = vld [vmem:[%s2 + $0xc0] sm:$0xff]
  %v391 = vld [vmem:[%s2 + $0xc8] sm:$0xff]
  %v392 = vld [vmem:[%s2 + $0xd0] sm:$0xff]
  %v393 = vld [vmem:[%s2 + $0xd8] sm:$0xff]
  %v394 = vld [vmem:[%s2 + $0xe0] sm:$0xff]
  %v395 = vld [vmem:[%s2 + $0xe8] sm:$0xff]
  %v396 = vld [vmem:[%s2 + $0xf0] sm:$0xff]
  %v397 = vld [vmem:[%s2 + $0xf8] sm:$0xff]
  %v398 = vld [vmem:[%s2 + $0x100] sm:$0xff]
  %v399 = vld [vmem:[%s2 + $0x108] sm:$0xff]
  %v400 = vld [vmem:[%s2 + $0x110] sm:$0xff]
  %v401 = vld [vmem:[%s2 + $0x118] sm:$0xff]
  %v402 = vld [vmem:[%s2 + $0x120] sm:$0xff]
  %v403 = vld [vmem:[%s2 + $0x128] sm:$0xff]
  %v404 = vld [vmem:[%s2 + $0x130] sm:$0xff]
  %v405 = vld [vmem:[%s2 + $0x138] sm:$0xff]
  %v406 = vld [vmem:[%s2 + $0x140] sm:$0xff]
  %v407 = vld [vmem:[%s2 + $0x148] sm:$0xff]
  %v408 = vld [vmem:[%s2 + $0x150] sm:$0xff]
  %v409 = vld [vmem:[%s2 + $0x158] sm:$0xff]
  %v410 = vld [vmem:[%s2 + $0x160] sm:$0xff]
  %v411 = vld [vmem:[%s2 + $0x168] sm:$0xff]
  %v412 = vld [vmem:[%s2 + $0x170] sm:$0xff]
  %v413 = vld [vmem:[%s2 + $0x178] sm:$0xff]
  %v414 = vld [vmem:[%s2 + $0x180] sm:$0xff]
  %v415 = vld [vmem:[%s2 + $0x188] sm:$0xff]
  %v416 = vld [vmem:[%s2 + $0x190] sm:$0xff]
  %v417 = vld [vmem:[%s2 + $0x198] sm:$0xff]
  %v418 = vld [vmem:[%s2 + $0x1a0] sm:$0xff]
  %v419 = vld [vmem:[%s2 + $0x1a8] sm:$0xff]
  %v420 = vld [vmem:[%s2 + $0x1b0] sm:$0xff]
  %v421 = vld [vmem:[%s2 + $0x1b8] sm:$0xff]
  %v422 = vld [vmem:[%s2 + $0x1c0] sm:$0xff]
  %v423 = vld [vmem:[%s2 + $0x1c8] sm:$0xff]
  %v424 = vld [vmem:[%s2 + $0x1d0] sm:$0xff]
  %v425 = vld [vmem:[%s2 + $0x1d8] sm:$0xff]
  %v426 = vld [vmem:[%s2 + $0x1e0] sm:$0xff]
  %v427 = vld [vmem:[%s2 + $0x1e8] sm:$0xff]
  %v428 = vld [vmem:[%s2 + $0x1f0] sm:$0xff]
  %v429 = vld [vmem:[%s2 + $0x1f8] sm:$0xff]
  loop: start=0, step=1, limit=8
  $region18: #{forward.7} parent=0 // loop_pre_header
    _
  $region19: #{forward.7} parent=0 // loop_header
    %s431 = sphi 0, %s435
    %p432 = scmp.ge.s32.totalorder %s431, 8
    %v436 = vphi 0.0, %v611
    %v437 = vphi 0.0, %v609
  $region20: #{forward.7} parent=0 // loop_header_branch
    %434 = sbr.rel (%p432) target = $region24
  $region21: #{forward.7} parent=0 // loop_body
    %s438 = smul.u32 %s431, 4
    %s439 = smul.addr %s438, 8
    %s440 = scalar_lea.vmem [#allocation2], %s439
    %v441 = vld [vmem:[%s440] sm:$0xff]
    %v442 = vld [vmem:[%s440 + $0x8] sm:$0xff]
    %v443 = vld [vmem:[%s440 + $0x10] sm:$0xff]
    %v444 = vld [vmem:[%s440 + $0x18] sm:$0xff]
    %445 = vmatprep.subr.mxu0 %v367
    %446 = vmatpush1.msra.mxu0 %v366
    %447 = vmatprep.subr.mxu0 %v371
    %448 = vmatpush1.msra.mxu0 %v370
    %449 = vmatprep.subr.mxu0 %v375
    %450 = vmatpush1.msra.mxu0 %v374
    %451 = vmatprep.subr.mxu0 %v379
    %452 = vmatpush1.msra.mxu0 %v378
    %453 = vmatprep.subr.mxu0 %v383
    %454 = vmatpush1.msra.mxu0 %v382
    %455 = vmatprep.subr.mxu0 %v387
    %456 = vmatpush1.msra.mxu0 %v386
    %457 = vmatprep.subr.mxu0 %v391
    %458 = vmatpush1.msra.mxu0 %v390
    %459 = vmatprep.subr.mxu0 %v395
    %460 = vmatpush1.msra.mxu0 %v394
    %461 = vmatprep.subr.mxu0 %v399
    %462 = vmatpush1.msra.mxu0 %v398
    %463 = vmatprep.subr.mxu0 %v403
    %464 = vmatpush1.msra.mxu0 %v402
    %465 = vmatprep.subr.mxu0 %v407
    %466 = vmatpush1.msra.mxu0 %v406
    %467 = vmatprep.subr.mxu0 %v411
    %468 = vmatpush1.msra.mxu0 %v410
    %469 = vmatprep.subr.mxu0 %v415
    %470 = vmatpush1.msra.mxu0 %v414
    %471 = vmatprep.subr.mxu0 %v419
    %472 = vmatpush1.msra.mxu0 %v418
    %473 = vmatprep.subr.mxu0 %v423
    %474 = vmatpush1.msra.mxu0 %v422
    %475 = vmatprep.subr.mxu0 %v427
    %476 = vmatpush1.msra.mxu0 %v426
    %477 = vmatprep.subr.mxu0 0.0
    %478 = vmatpush1.msra.mxu0 0.0
    %479 = vmatprep.subr.mxu0 0.0
    %480 = vmatpush1.msra.mxu0 0.0
    %481 = vmatprep.subr.mxu0 0.0
    %482 = vmatpush1.msra.mxu0 0.0
    %483 = vmatprep.subr.mxu0 0.0
    %484 = vmatpush1.msra.mxu0 0.0
    %485 = vmatprep.subr.mxu0 0.0
    %486 = vmatpush1.msra.mxu0 0.0
    %487 = vmatprep.subr.mxu0 0.0
    %488 = vmatpush1.msra.mxu0 0.0
    %489 = vmatprep.subr.mxu0 0.0
    %490 = vmatpush1.msra.mxu0 0.0
    %491 = vmatprep.subr.mxu0 0.0
    %492 = vmatpush1.msra.mxu0 0.0
    %493 = vmatprep.subr.mxu0 0.0
    %494 = vmatpush1.msra.mxu0 0.0
    %495 = vmatprep.subr.mxu0 0.0
    %496 = vmatpush1.msra.mxu0 0.0
    %497 = vmatprep.subr.mxu0 0.0
    %498 = vmatpush1.msra.mxu0 0.0
    %499 = vmatprep.subr.mxu0 0.0
    %500 = vmatpush1.msra.mxu0 0.0
    %501 = vmatprep.subr.mxu0 0.0
    %502 = vmatpush1.msra.mxu0 0.0
    %503 = vmatprep.subr.mxu0 0.0
    %504 = vmatpush1.msra.mxu0 0.0
    %505 = vmatprep.subr.mxu0 0.0
    %506 = vmatpush1.msra.mxu0 0.0
    %507 = vmatprep.subr.mxu0 0.0
    %508 = vmatpush1.msra.mxu0 0.0
    %509 = vmatprep.mubr.f32.mxu0 0.0
    %510 = vmatmul.mubr.f32.gmra.mrb[0].mxu0 %v436
    %v511 = vpop.f32.mrb[0].mxu0
    %v512 = vadd.f32 0.0, %v511
    %v513 = vpop.f32.mrb[0].mxu0
    %v514 = vadd.f32 0.0, %v513
    %515 = vdwg.mxu0
    %516 = vmatprep.subr.mxu0 %v369
    %517 = vmatpush1.msra.mxu0 %v368
    %518 = vmatprep.subr.mxu0 %v373
    %519 = vmatpush1.msra.mxu0 %v372
    %520 = vmatprep.subr.mxu0 %v377
    %521 = vmatpush1.msra.mxu0 %v376
    %522 = vmatprep.subr.mxu0 %v381
    %523 = vmatpush1.msra.mxu0 %v380
    %524 = vmatprep.subr.mxu0 %v385
    %525 = vmatpush1.msra.mxu0 %v384
    %526 = vmatprep.subr.mxu0 %v389
    %527 = vmatpush1.msra.mxu0 %v388
    %528 = vmatprep.subr.mxu0 %v393
    %529 = vmatpush1.msra.mxu0 %v392
    %530 = vmatprep.subr.mxu0 %v397
    %531 = vmatpush1.msra.mxu0 %v396
    %532 = vmatprep.subr.mxu0 %v401
    %533 = vmatpush1.msra.mxu0 %v400
    %534 = vmatprep.subr.mxu0 %v405
    %535 = vmatpush1.msra.mxu0 %v404
    %536 = vmatprep.subr.mxu0 %v409
    %537 = vmatpush1.msra.mxu0 %v408
    %538 = vmatprep.subr.mxu0 %v413
    %539 = vmatpush1.msra.mxu0 %v412
    %540 = vmatprep.subr.mxu0 %v417
    %541 = vmatpush1.msra.mxu0 %v416
    %542 = vmatprep.subr.mxu0 %v421
    %543 = vmatpush1.msra.mxu0 %v420
    %544 = vmatprep.subr.mxu0 %v425
    %545 = vmatpush1.msra.mxu0 %v424
    %546 = vmatprep.subr.mxu0 %v429
    %547 = vmatpush1.msra.mxu0 %v428
    %548 = vmatprep.subr.mxu0 0.0
    %549 = vmatpush1.msra.mxu0 0.0
    %550 = vmatprep.subr.mxu0 0.0
    %551 = vmatpush1.msra.mxu0 0.0
    %552 = vmatprep.subr.mxu0 0.0
    %553 = vmatpush1.msra.mxu0 0.0
    %554 = vmatprep.subr.mxu0 0.0
    %555 = vmatpush1.msra.mxu0 0.0
    %556 = vmatprep.subr.mxu0 0.0
    %557 = vmatpush1.msra.mxu0 0.0
    %558 = vmatprep.subr.mxu0 0.0
    %559 = vmatpush1.msra.mxu0 0.0
    %560 = vmatprep.subr.mxu0 0.0
    %561 = vmatpush1.msra.mxu0 0.0
    %562 = vmatprep.subr.mxu0 0.0
    %563 = vmatpush1.msra.mxu0 0.0
    %564 = vmatprep.subr.mxu0 0.0
    %565 = vmatpush1.msra.mxu0 0.0
    %566 = vmatprep.subr.mxu0 0.0
    %567 = vmatpush1.msra.mxu0 0.0
    %568 = vmatprep.subr.mxu0 0.0
    %569 = vmatpush1.msra.mxu0 0.0
    %570 = vmatprep.subr.mxu0 0.0
    %571 = vmatpush1.msra.mxu0 0.0
    %572 = vmatprep.subr.mxu0 0.0
    %573 = vmatpush1.msra.mxu0 0.0
    %574 = vmatprep.subr.mxu0 0.0
    %575 = vmatpush1.msra.mxu0 0.0
    %576 = vmatprep.subr.mxu0 0.0
    %577 = vmatpush1.msra.mxu0 0.0
    %578 = vmatprep.subr.mxu0 0.0
    %579 = vmatpush1.msra.mxu0 0.0
    %580 = vmatprep.mubr.f32.mxu0 0.0
    %581 = vmatmul.mubr.f32.gmra.mrb[0].mxu0 %v436
    %v582 = vpop.f32.mrb[0].mxu0
    %v583 = vadd.f32 0.0, %v582
    %v584 = vpop.f32.mrb[0].mxu0
    %v585 = vadd.f32 0.0, %v584
    %586 = vdwg.mxu0
    %v587 = vadd.f32 %v441, %v512
    %v588 = vadd.f32 %v442, %v514
    %v589 = vadd.f32 %v443, %v583
    %v590 = vadd.f32 %v444, %v585
    %v591 = vsub.f32 0.0, %v587
    %v592 = vmul.f32 %v591, 1.442695
    %v593 = vpow.pop %v592
    %v594 = vadd.f32 %v593, 1.0
    %v595 = vrcp.pop %v594
    %v596 = vsub.f32 0.0, %v588
    %v597 = vmul.f32 %v596, 1.442695
    %v598 = vpow.pop %v597
    %v599 = vadd.f32 %v598, 1.0
    %v600 = vrcp.pop %v599
    %v601 = vtanh.pop %v589
    %v602 = vsub.f32 0.0, %v590
    %v603 = vmul.f32 %v602, 1.442695
    %v604 = vpow.pop %v603
    %v605 = vadd.f32 %v604, 1.0
    %v606 = vrcp.pop %v605
    %v607 = vmul.f32 %v600, %v437
    %v608 = vmul.f32 %v595, %v601
    %v609 = vadd.f32 %v607, %v608
    %v610 = vtanh.pop %v609
    %v611 = vmul.f32 %v606, %v610
    %s612 = smul.u32 %s431, 8
    %s613 = scalar_lea.vmem %s4, %s612
    %614 = vst [vmem:[%s613] sm:$0xff] %v611
  $region22: #{forward.7} parent=0 // loop_footer
    %s435 = sadd.s32 1, %s431
  $region23: #{forward.7} parent=0 // loop_footer_branch
    %430 = sbr.rel target = $region19
  $region24: #{forward.7} parent=0 // loop_exit
    _
  // Predicated region
  $region25: #{forward.7} parent=0 // pred_check
    _
  $region26: #{forward.7} parent=0 // pred_check_branch
    %616 = sbr.rel (0) target = $region28
  $region27: #{forward.7} parent=0 // pred_region
    _
  $region28: #{forward.7} parent=0 // pred_fallthru
    _
  // Predicated region
  $region29: #{forward.7} parent=0 // pred_check
    _
  $region30: #{forward.7} parent=0 // pred_check_branch
    %618 = sbr.rel (0) target = $region32
  $region31: #{forward.7} parent=0 // pred_region
    _
  $region32: #{forward.7} parent=0 // pred_fallthru
    _

</llo_original>
